<compile_context>
chip_gen: v7x
topology: tpu7x:2x2x1
jax: 0.10.0
libtpu: 0.0.40
codegen_flags: <defaults>
</compile_context>

<pallas_src>
import numpy as np
import jax
import jax.numpy as jnp
from jax import lax
from jax.experimental import pallas as pl
from jax.experimental.pallas import tpu as pltpu


# ----------------------------- JPEG constants -------------------------------

_Q_LUMA = np.array(
    [[16, 11, 10, 16, 24, 40, 51, 61],
     [12, 12, 14, 19, 26, 58, 60, 55],
     [14, 13, 16, 24, 40, 57, 69, 56],
     [14, 17, 22, 29, 51, 87, 80, 62],
     [18, 22, 37, 56, 68, 109, 103, 77],
     [24, 35, 55, 64, 81, 104, 113, 92],
     [49, 64, 78, 87, 103, 121, 120, 101],
     [72, 92, 95, 98, 112, 100, 103, 99]], dtype=np.float32)

_Q_CHROMA = np.array(
    [[17, 18, 24, 47, 99, 99, 99, 99],
     [18, 21, 26, 66, 99, 99, 99, 99],
     [24, 26, 56, 99, 99, 99, 99, 99],
     [47, 66, 99, 99, 99, 99, 99, 99],
     [99, 99, 99, 99, 99, 99, 99, 99],
     [99, 99, 99, 99, 99, 99, 99, 99],
     [99, 99, 99, 99, 99, 99, 99, 99],
     [99, 99, 99, 99, 99, 99, 99, 99]], dtype=np.float32)


def _scaled_qtable(base, quality):
    """libjpeg quality scaling of a base quantization table."""
    quality = max(1, min(100, int(quality)))
    scale = 5000 // quality if quality < 50 else 200 - 2 * quality
    q = np.floor((base * scale + 50.0) / 100.0)
    return np.clip(q, 1.0, 255.0).astype(np.float32)


def _dct8():
    """Orthonormal 8-point DCT-II matrix D (2D DCT of block B is D @ B @ D.T)."""
    n = np.arange(8, dtype=np.float64)
    k = n[:, None]
    d = np.cos((2.0 * n[None, :] + 1.0) * k * np.pi / 16.0) * np.sqrt(2.0 / 8.0)
    d[0, :] = np.sqrt(1.0 / 8.0)
    return d.astype(np.float32)


# ------------------------------- Pallas kernel -------------------------------

def _jpeg_kernel(x_ref, dh_ref, dw_ref, q_ref, o_ref):
    # x_ref: (1, 3, TH, TW) tile of one image, float in [0, 1]
    x = x_ref[...].astype(jnp.float32)
    # ToPILImage: mul(255).byte() (truncation to uint8)
    x = jnp.floor(jnp.clip(x * 255.0, 0.0, 255.0))

    r = x[0, 0]
    g = x[0, 1]
    b = x[0, 2]

    # RGB -> YCbCr (JFIF), luma centered at 0
    y_ = 0.299 * r + 0.587 * g + 0.114 * b - 128.0
    cb = -0.168736 * r - 0.331264 * g + 0.5 * b
    cr = 0.5 * r - 0.418688 * g - 0.081312 * b

    dh = dh_ref[...]   # (TH, TH) block-diagonal 8-pt DCT along rows
    dw = dw_ref[...]   # (TW, TW) block-diagonal 8-pt DCT along cols

    # stacked constant tables: (4, TH, TW) = [q_luma, 1/q_luma, q_chroma, 1/q_chroma]
    qy, qyi = q_ref[0], q_ref[1]
    qc, qci = q_ref[2], q_ref[3]

    def roundtrip(ch, q, q_inv):
        # forward blockwise 2D DCT:  dh @ ch @ dw.T
        # (transposes are folded into the MXU contraction dims; no dht/dwt
        #  operands resident in VMEM)
        t = lax.dot_general(dh, ch, (((1,), (0,)), ((), ())),
                            preferred_element_type=jnp.float32)
        coef = lax.dot_general(t, dw, (((1,), (1,)), ((), ())),
                               preferred_element_type=jnp.float32)
        # quantize (precomputed reciprocal -> single VALU multiply) + dequantize
        deq = jnp.round(coef * q_inv) * q
        # inverse blockwise 2D DCT:  dh.T @ deq @ dw
        t2 = lax.dot_general(dh, deq, (((0,), (0,)), ((), ())),
                             preferred_element_type=jnp.float32)
        return lax.dot_general(t2, dw, (((1,), (0,)), ((), ())),
                               preferred_element_type=jnp.float32)

    yr = roundtrip(y_, qy, qyi) + 128.0
    cbr = roundtrip(cb, qc, qci)
    crr = roundtrip(cr, qc, qci)

    # YCbCr -> RGB
    rr = yr + 1.402 * crr
    gr = yr - 0.344136 * cbr - 0.714136 * crr
    br = yr + 1.772 * cbr

    def to_unit(v):
        # decoder writes uint8, ToTensor() divides by 255
        return jnp.round(jnp.clip(v, 0.0, 255.0)) * (1.0 / 255.0)

    o_ref[0, 0] = to_unit(rr).astype(o_ref.dtype)
    o_ref[0, 1] = to_unit(gr).astype(o_ref.dtype)
    o_ref[0, 2] = to_unit(br).astype(o_ref.dtype)


# --------------------------------- wrapper -----------------------------------

def _pick_tile(dim, align, cap):
    """Largest multiple of `align` that divides `dim`, capped at `cap`.

    Falls back to the full dim (always a legal block: 'equal to array dim')
    when no aligned divisor exists, or when the only divisors are so small
    that per-grid-step overhead would dominate.
    """
    if dim <= cap:
        return dim
    t = (cap // align) * align
    while t >= align:
        if dim % t == 0:
            if t >= 64 or dim > 4096:
                return t
            break
        t -= align
    return dim


def jpeg_filter(x, quality=75):
    """Pallas implementation of JPEGFilter.forward. x: (N, 3, H, W) float in [0,1]."""
    N, C, H, W = x.shape
    assert C == 3 and H % 8 == 0 and W % 8 == 0, "JPEG needs RGB and 8-aligned H/W"

    # Lane-dense packing for narrow images: stack the batch along W so the last
    # (lane) dim is as wide as possible.  8x8 JPEG blocks never straddle an
    # image boundary because W % 8 == 0, so the math is unchanged.
    packed = (W < 128) and (N > 1)
    if packed:
        xk = jnp.transpose(x, (1, 2, 0, 3)).reshape(1, C, H, N * W)
        Nk, Wk = 1, N * W
    else:
        xk = x
        Nk, Wk = N, W

    # Tile sizes: H tiles multiple of 8 capped at 128 (bounds block-diagonal
    # MXU redundancy at 16x along H), W tiles multiple of 128 capped at 256
    # (lane-dense, >=32K px per grid step).  Caps VMEM independent of image
    # size; constants below are built at tile size only.
    TH = _pick_tile(H, 8, 128)
    TW = _pick_tile(Wk, 128, 256)

    d8 = _dct8()
    dh = np.kron(np.eye(TH // 8, dtype=np.float32), d8)    # (TH, TH) block-diagonal
    dw = np.kron(np.eye(TW // 8, dtype=np.float32), d8)    # (TW, TW) block-diagonal
    qy = np.tile(_scaled_qtable(_Q_LUMA, quality), (TH // 8, TW // 8))    # (TH, TW)
    qc = np.tile(_scaled_qtable(_Q_CHROMA, quality), (TH // 8, TW // 8))  # (TH, TW)
    qyi = (1.0 / qy.astype(np.float64)).astype(np.float32)
    qci = (1.0 / qc.astype(np.float64)).astype(np.float32)
    qtab = np.stack([qy, qyi, qc, qci], axis=0)             # (4, TH, TW)

    grid = (Nk, H // TH, Wk // TW)
    img_spec = pl.BlockSpec((1, C, TH, TW), lambda n, i, j: (n, 0, i, j))
    const_hh = pl.BlockSpec((TH, TH), lambda n, i, j: (0, 0))
    const_ww = pl.BlockSpec((TW, TW), lambda n, i, j: (0, 0))
    const_q = pl.BlockSpec((4, TH, TW), lambda n, i, j: (0, 0, 0))

    out = pl.pallas_call(
        _jpeg_kernel,
        out_shape=jax.ShapeDtypeStruct((Nk, C, H, Wk), x.dtype),
        grid=grid,
        in_specs=[img_spec, const_hh, const_ww, const_q],
        out_specs=img_spec,
        compiler_params=pltpu.CompilerParams(
            dimension_semantics=("parallel", "parallel", "parallel")),
    )(
        xk,
        jnp.asarray(dh), jnp.asarray(dw), jnp.asarray(qtab),
    )

    if packed:
        out = jnp.transpose(out.reshape(C, H, N, W), (2, 0, 1, 3))
    return out


# ----------------------------------- main ------------------------------------

if __name__ == "__main__":
    key = jax.random.PRNGKey(0)

    # Small shape matching the module's typical use (batch of RGB images).
    # Exercises the lane-packed narrow-image path.
    x = jax.random.uniform(key, (2, 3, 16, 16), dtype=jnp.float32)  # NCHW in [0,1]
    y = jpeg_filter(x, quality=75)
    jax.block_until_ready(y)
    assert y.shape == x.shape and y.dtype == x.dtype
    assert bool(jnp.all(jnp.isfinite(y)))
    assert bool(jnp.all((y >= 0.0) & (y <= 1.0)))

    # Exercise the tiled-W path (multiple grid steps, lane-dense 128-wide tiles).
    x2 = jax.random.uniform(jax.random.PRNGKey(0), (1, 3, 16, 384), dtype=jnp.float32)
    y2 = jpeg_filter(x2, quality=75)
    jax.block_until_ready(y2)
    assert y2.shape == x2.shape and y2.dtype == x2.dtype
    assert bool(jnp.all(jnp.isfinite(y2)))
    assert bool(jnp.all((y2 >= 0.0) & (y2 <= 1.0)))

    # Exercise the tiled-H path (TH cap = 128, multi-row grid).
    x3 = jax.random.uniform(jax.random.PRNGKey(0), (1, 3, 256, 128), dtype=jnp.float32)
    y3 = jpeg_filter(x3, quality=75)
    jax.block_until_ready(y3)
    assert y3.shape == x3.shape and y3.dtype == x3.dtype
    assert bool(jnp.all(jnp.isfinite(y3)))
    assert bool(jnp.all((y3 >= 0.0) & (y3 <= 1.0)))

    print("KERNEL_OK")
</pallas_src>

<mosaic_0001>
module attributes {stable_mosaic.version = 11 : i64} {
  func.func @_jpeg_kernel(%arg0: i32, %arg1: i32, %arg2: i32, %arg3: memref<1x3x16x32xf32, #tpu.memory_space<vmem>>, %arg4: memref<16x16xf32, #tpu.memory_space<vmem>>, %arg5: memref<32x32xf32, #tpu.memory_space<vmem>>, %arg6: memref<4x16x32xf32, #tpu.memory_space<vmem>>, %arg7: memref<1x3x16x32xf32, #tpu.memory_space<vmem>>) attributes {dimension_semantics = [#tpu.dimension_semantics<parallel>, #tpu.dimension_semantics<parallel>, #tpu.dimension_semantics<parallel>], iteration_bounds = array<i64: 1, 1, 1>, scalar_prefetch = 0 : i64, scratch_operands = 0 : i64, tpu.core_type = #tpu.core_type<tc>, window_params = [{transform_indices = @transform_0, window_bounds = array<i64: 1, 3, 16, 32>}, {pipeline_mode = #tpu.pipeline_mode<synchronous>, transform_indices = @transform_1, window_bounds = array<i64: 16, 16>}, {pipeline_mode = #tpu.pipeline_mode<synchronous>, transform_indices = @transform_2, window_bounds = array<i64: 32, 32>}, {pipeline_mode = #tpu.pipeline_mode<synchronous>, transform_indices = @transform_3, window_bounds = array<i64: 4, 16, 32>}, {transform_indices = @transform_4, window_bounds = array<i64: 1, 3, 16, 32>}]} {
    %c0 = arith.constant 0 : index
    %c0_0 = arith.constant 0 : index
    %c0_1 = arith.constant 0 : index
    %c0_2 = arith.constant 0 : index
    %0 = vector.load %arg3[%c0, %c0_0, %c0_1, %c0_2] : memref<1x3x16x32xf32, #tpu.memory_space<vmem>>, vector<1x3x16x32xf32>
    %cst = arith.constant 2.550000e+02 : f32
    %1 = vector.broadcast %cst : f32 to vector<1x3x16x32xf32>
    %2 = arith.mulf %0, %1 : vector<1x3x16x32xf32>
    %cst_3 = arith.constant 0.000000e+00 : f32
    %cst_4 = arith.constant 2.550000e+02 : f32
    %3 = vector.broadcast %cst_3 : f32 to vector<1x3x16x32xf32>
    %4 = arith.maximumf %3, %2 : vector<1x3x16x32xf32>
    %5 = vector.broadcast %cst_4 : f32 to vector<1x3x16x32xf32>
    %6 = arith.minimumf %5, %4 : vector<1x3x16x32xf32>
    %7 = math.floor %6 : vector<1x3x16x32xf32>
    %8 = vector.extract_strided_slice %7 {offsets = [0, 0, 0, 0], sizes = [1, 1, 16, 32], strides = [1, 1, 1, 1]} : vector<1x3x16x32xf32> to vector<1x1x16x32xf32>
    %9 = vector.shape_cast %8 : vector<1x1x16x32xf32> to vector<16x32xf32>
    %10 = vector.extract_strided_slice %7 {offsets = [0, 1, 0, 0], sizes = [1, 1, 16, 32], strides = [1, 1, 1, 1]} : vector<1x3x16x32xf32> to vector<1x1x16x32xf32>
    %11 = vector.shape_cast %10 : vector<1x1x16x32xf32> to vector<16x32xf32>
    %12 = vector.extract_strided_slice %7 {offsets = [0, 2, 0, 0], sizes = [1, 1, 16, 32], strides = [1, 1, 1, 1]} : vector<1x3x16x32xf32> to vector<1x1x16x32xf32>
    %13 = vector.shape_cast %12 : vector<1x1x16x32xf32> to vector<16x32xf32>
    %cst_5 = arith.constant 2.990000e-01 : f32
    %14 = vector.broadcast %cst_5 : f32 to vector<16x32xf32>
    %15 = arith.mulf %14, %9 : vector<16x32xf32>
    %cst_6 = arith.constant 5.870000e-01 : f32
    %16 = vector.broadcast %cst_6 : f32 to vector<16x32xf32>
    %17 = arith.mulf %16, %11 : vector<16x32xf32>
    %18 = arith.addf %15, %17 : vector<16x32xf32>
    %cst_7 = arith.constant 1.140000e-01 : f32
    %19 = vector.broadcast %cst_7 : f32 to vector<16x32xf32>
    %20 = arith.mulf %19, %13 : vector<16x32xf32>
    %21 = arith.addf %18, %20 : vector<16x32xf32>
    %cst_8 = arith.constant 1.280000e+02 : f32
    %22 = vector.broadcast %cst_8 : f32 to vector<16x32xf32>
    %23 = arith.subf %21, %22 : vector<16x32xf32>
    %cst_9 = arith.constant -1.687360e-01 : f32
    %24 = vector.broadcast %cst_9 : f32 to vector<16x32xf32>
    %25 = arith.mulf %24, %9 : vector<16x32xf32>
    %cst_10 = arith.constant 3.312640e-01 : f32
    %26 = vector.broadcast %cst_10 : f32 to vector<16x32xf32>
    %27 = arith.mulf %26, %11 : vector<16x32xf32>
    %28 = arith.subf %25, %27 : vector<16x32xf32>
    %cst_11 = arith.constant 5.000000e-01 : f32
    %29 = vector.broadcast %cst_11 : f32 to vector<16x32xf32>
    %30 = arith.mulf %29, %13 : vector<16x32xf32>
    %31 = arith.addf %28, %30 : vector<16x32xf32>
    %cst_12 = arith.constant 5.000000e-01 : f32
    %32 = vector.broadcast %cst_12 : f32 to vector<16x32xf32>
    %33 = arith.mulf %32, %9 : vector<16x32xf32>
    %cst_13 = arith.constant 4.186880e-01 : f32
    %34 = vector.broadcast %cst_13 : f32 to vector<16x32xf32>
    %35 = arith.mulf %34, %11 : vector<16x32xf32>
    %36 = arith.subf %33, %35 : vector<16x32xf32>
    %cst_14 = arith.constant 8.131200e-02 : f32
    %37 = vector.broadcast %cst_14 : f32 to vector<16x32xf32>
    %38 = arith.mulf %37, %13 : vector<16x32xf32>
    %39 = arith.subf %36, %38 : vector<16x32xf32>
    %c0_15 = arith.constant 0 : index
    %c0_16 = arith.constant 0 : index
    %40 = vector.load %arg4[%c0_15, %c0_16] : memref<16x16xf32, #tpu.memory_space<vmem>>, vector<16x16xf32>
    %c0_17 = arith.constant 0 : index
    %c0_18 = arith.constant 0 : index
    %41 = vector.load %arg5[%c0_17, %c0_18] : memref<32x32xf32, #tpu.memory_space<vmem>>, vector<32x32xf32>
    %c0_19 = arith.constant 0 : index
    %c0_20 = arith.constant 0 : index
    %c0_21 = arith.constant 0 : index
    %42 = vector.load %arg6[%c0_19, %c0_20, %c0_21] : memref<4x16x32xf32, #tpu.memory_space<vmem>>, vector<1x16x32xf32>
    %43 = vector.shape_cast %42 : vector<1x16x32xf32> to vector<16x32xf32>
    %c1 = arith.constant 1 : index
    %c0_22 = arith.constant 0 : index
    %c0_23 = arith.constant 0 : index
    %44 = vector.load %arg6[%c1, %c0_22, %c0_23] : memref<4x16x32xf32, #tpu.memory_space<vmem>>, vector<1x16x32xf32>
    %45 = vector.shape_cast %44 : vector<1x16x32xf32> to vector<16x32xf32>
    %c2 = arith.constant 2 : index
    %c0_24 = arith.constant 0 : index
    %c0_25 = arith.constant 0 : index
    %46 = vector.load %arg6[%c2, %c0_24, %c0_25] : memref<4x16x32xf32, #tpu.memory_space<vmem>>, vector<1x16x32xf32>
    %47 = vector.shape_cast %46 : vector<1x16x32xf32> to vector<16x32xf32>
    %c3 = arith.constant 3 : index
    %c0_26 = arith.constant 0 : index
    %c0_27 = arith.constant 0 : index
    %48 = vector.load %arg6[%c3, %c0_26, %c0_27] : memref<4x16x32xf32, #tpu.memory_space<vmem>>, vector<1x16x32xf32>
    %49 = vector.shape_cast %48 : vector<1x16x32xf32> to vector<16x32xf32>
    %cst_28 = arith.constant dense<0.000000e+00> : vector<16x32xf32>
    %50 = tpu.matmul %40, %23, %cst_28 {dimension_numbers = #tpu.dot_dimension_numbers<[1], [0], [0], [1], [0, 0, 1, 1], [], []>} : vector<16x16xf32>, vector<16x32xf32>, vector<16x32xf32> -> vector<16x32xf32>
    %cst_29 = arith.constant dense<0.000000e+00> : vector<16x32xf32>
    %51 = tpu.matmul %50, %41, %cst_29 {dimension_numbers = #tpu.dot_dimension_numbers<[1], [1], [0], [0], [0, 0, 1, 0], [], []>} : vector<16x32xf32>, vector<32x32xf32>, vector<16x32xf32> -> vector<16x32xf32>
    %52 = arith.mulf %51, %45 : vector<16x32xf32>
    %53 = math.roundeven %52 : vector<16x32xf32>
    %54 = arith.mulf %53, %43 : vector<16x32xf32>
    %cst_30 = arith.constant dense<0.000000e+00> : vector<16x32xf32>
    %55 = tpu.matmul %40, %54, %cst_30 {dimension_numbers = #tpu.dot_dimension_numbers<[0], [0], [1], [1], [0, 1, 1, 1], [], []>} : vector<16x16xf32>, vector<16x32xf32>, vector<16x32xf32> -> vector<16x32xf32>
    %cst_31 = arith.constant dense<0.000000e+00> : vector<16x32xf32>
    %56 = tpu.matmul %55, %41, %cst_31 {dimension_numbers = #tpu.dot_dimension_numbers<[1], [0], [0], [1], [0, 0, 1, 1], [], []>} : vector<16x32xf32>, vector<32x32xf32>, vector<16x32xf32> -> vector<16x32xf32>
    %cst_32 = arith.constant 1.280000e+02 : f32
    %57 = vector.broadcast %cst_32 : f32 to vector<16x32xf32>
    %58 = arith.addf %56, %57 : vector<16x32xf32>
    %cst_33 = arith.constant dense<0.000000e+00> : vector<16x32xf32>
    %59 = tpu.matmul %40, %31, %cst_33 {dimension_numbers = #tpu.dot_dimension_numbers<[1], [0], [0], [1], [0, 0, 1, 1], [], []>} : vector<16x16xf32>, vector<16x32xf32>, vector<16x32xf32> -> vector<16x32xf32>
    %cst_34 = arith.constant dense<0.000000e+00> : vector<16x32xf32>
    %60 = tpu.matmul %59, %41, %cst_34 {dimension_numbers = #tpu.dot_dimension_numbers<[1], [1], [0], [0], [0, 0, 1, 0], [], []>} : vector<16x32xf32>, vector<32x32xf32>, vector<16x32xf32> -> vector<16x32xf32>
    %61 = arith.mulf %60, %49 : vector<16x32xf32>
    %62 = math.roundeven %61 : vector<16x32xf32>
    %63 = arith.mulf %62, %47 : vector<16x32xf32>
    %cst_35 = arith.constant dense<0.000000e+00> : vector<16x32xf32>
    %64 = tpu.matmul %40, %63, %cst_35 {dimension_numbers = #tpu.dot_dimension_numbers<[0], [0], [1], [1], [0, 1, 1, 1], [], []>} : vector<16x16xf32>, vector<16x32xf32>, vector<16x32xf32> -> vector<16x32xf32>
    %cst_36 = arith.constant dense<0.000000e+00> : vector<16x32xf32>
    %65 = tpu.matmul %64, %41, %cst_36 {dimension_numbers = #tpu.dot_dimension_numbers<[1], [0], [0], [1], [0, 0, 1, 1], [], []>} : vector<16x32xf32>, vector<32x32xf32>, vector<16x32xf32> -> vector<16x32xf32>
    %cst_37 = arith.constant dense<0.000000e+00> : vector<16x32xf32>
    %66 = tpu.matmul %40, %39, %cst_37 {dimension_numbers = #tpu.dot_dimension_numbers<[1], [0], [0], [1], [0, 0, 1, 1], [], []>} : vector<16x16xf32>, vector<16x32xf32>, vector<16x32xf32> -> vector<16x32xf32>
    %cst_38 = arith.constant dense<0.000000e+00> : vector<16x32xf32>
    %67 = tpu.matmul %66, %41, %cst_38 {dimension_numbers = #tpu.dot_dimension_numbers<[1], [1], [0], [0], [0, 0, 1, 0], [], []>} : vector<16x32xf32>, vector<32x32xf32>, vector<16x32xf32> -> vector<16x32xf32>
    %68 = arith.mulf %67, %49 : vector<16x32xf32>
    %69 = math.roundeven %68 : vector<16x32xf32>
    %70 = arith.mulf %69, %47 : vector<16x32xf32>
    %cst_39 = arith.constant dense<0.000000e+00> : vector<16x32xf32>
    %71 = tpu.matmul %40, %70, %cst_39 {dimension_numbers = #tpu.dot_dimension_numbers<[0], [0], [1], [1], [0, 1, 1, 1], [], []>} : vector<16x16xf32>, vector<16x32xf32>, vector<16x32xf32> -> vector<16x32xf32>
    %cst_40 = arith.constant dense<0.000000e+00> : vector<16x32xf32>
    %72 = tpu.matmul %71, %41, %cst_40 {dimension_numbers = #tpu.dot_dimension_numbers<[1], [0], [0], [1], [0, 0, 1, 1], [], []>} : vector<16x32xf32>, vector<32x32xf32>, vector<16x32xf32> -> vector<16x32xf32>
    %cst_41 = arith.constant 1.402000e+00 : f32
    %73 = vector.broadcast %cst_41 : f32 to vector<16x32xf32>
    %74 = arith.mulf %73, %72 : vector<16x32xf32>
    %75 = arith.addf %58, %74 : vector<16x32xf32>
    %cst_42 = arith.constant 3.441360e-01 : f32
    %76 = vector.broadcast %cst_42 : f32 to vector<16x32xf32>
    %77 = arith.mulf %76, %65 : vector<16x32xf32>
    %78 = arith.subf %58, %77 : vector<16x32xf32>
    %cst_43 = arith.constant 7.141360e-01 : f32
    %79 = vector.broadcast %cst_43 : f32 to vector<16x32xf32>
    %80 = arith.mulf %79, %72 : vector<16x32xf32>
    %81 = arith.subf %78, %80 : vector<16x32xf32>
    %cst_44 = arith.constant 1.772000e+00 : f32
    %82 = vector.broadcast %cst_44 : f32 to vector<16x32xf32>
    %83 = arith.mulf %82, %65 : vector<16x32xf32>
    %84 = arith.addf %58, %83 : vector<16x32xf32>
    %cst_45 = arith.constant 0.000000e+00 : f32
    %cst_46 = arith.constant 2.550000e+02 : f32
    %85 = vector.broadcast %cst_45 : f32 to vector<16x32xf32>
    %86 = arith.maximumf %85, %75 : vector<16x32xf32>
    %87 = vector.broadcast %cst_46 : f32 to vector<16x32xf32>
    %88 = arith.minimumf %87, %86 : vector<16x32xf32>
    %89 = math.roundeven %88 : vector<16x32xf32>
    %cst_47 = arith.constant 0.00392156886 : f32
    %90 = vector.broadcast %cst_47 : f32 to vector<16x32xf32>
    %91 = arith.mulf %89, %90 : vector<16x32xf32>
    %c0_48 = arith.constant 0 : index
    %c0_49 = arith.constant 0 : index
    %c0_50 = arith.constant 0 : index
    %c0_51 = arith.constant 0 : index
    %92 = vector.load %arg7[%c0_48, %c0_49, %c0_50, %c0_51] : memref<1x3x16x32xf32, #tpu.memory_space<vmem>>, vector<1x1x16x32xf32>
    %93 = vector.shape_cast %92 : vector<1x1x16x32xf32> to vector<16x32xf32>
    %94 = vector.shape_cast %91 : vector<16x32xf32> to vector<1x1x16x32xf32>
    tpu.vector_store %arg7[%c0_48, %c0_49, %c0_50, %c0_51], %94 {strides = array<i32>} : memref<1x3x16x32xf32, #tpu.memory_space<vmem>>, vector<1x1x16x32xf32>,
    %cst_52 = arith.constant 0.000000e+00 : f32
    %cst_53 = arith.constant 2.550000e+02 : f32
    %95 = vector.broadcast %cst_52 : f32 to vector<16x32xf32>
    %96 = arith.maximumf %95, %81 : vector<16x32xf32>
    %97 = vector.broadcast %cst_53 : f32 to vector<16x32xf32>
    %98 = arith.minimumf %97, %96 : vector<16x32xf32>
    %99 = math.roundeven %98 : vector<16x32xf32>
    %cst_54 = arith.constant 0.00392156886 : f32
    %100 = vector.broadcast %cst_54 : f32 to vector<16x32xf32>
    %101 = arith.mulf %99, %100 : vector<16x32xf32>
    %c0_55 = arith.constant 0 : index
    %c1_56 = arith.constant 1 : index
    %c0_57 = arith.constant 0 : index
    %c0_58 = arith.constant 0 : index
    %102 = vector.load %arg7[%c0_55, %c1_56, %c0_57, %c0_58] : memref<1x3x16x32xf32, #tpu.memory_space<vmem>>, vector<1x1x16x32xf32>
    %103 = vector.shape_cast %102 : vector<1x1x16x32xf32> to vector<16x32xf32>
    %104 = vector.shape_cast %101 : vector<16x32xf32> to vector<1x1x16x32xf32>
    tpu.vector_store %arg7[%c0_55, %c1_56, %c0_57, %c0_58], %104 {strides = array<i32>} : memref<1x3x16x32xf32, #tpu.memory_space<vmem>>, vector<1x1x16x32xf32>,
    %cst_59 = arith.constant 0.000000e+00 : f32
    %cst_60 = arith.constant 2.550000e+02 : f32
    %105 = vector.broadcast %cst_59 : f32 to vector<16x32xf32>
    %106 = arith.maximumf %105, %84 : vector<16x32xf32>
    %107 = vector.broadcast %cst_60 : f32 to vector<16x32xf32>
    %108 = arith.minimumf %107, %106 : vector<16x32xf32>
    %109 = math.roundeven %108 : vector<16x32xf32>
    %cst_61 = arith.constant 0.00392156886 : f32
    %110 = vector.broadcast %cst_61 : f32 to vector<16x32xf32>
    %111 = arith.mulf %109, %110 : vector<16x32xf32>
    %c0_62 = arith.constant 0 : index
    %c2_63 = arith.constant 2 : index
    %c0_64 = arith.constant 0 : index
    %c0_65 = arith.constant 0 : index
    %112 = vector.load %arg7[%c0_62, %c2_63, %c0_64, %c0_65] : memref<1x3x16x32xf32, #tpu.memory_space<vmem>>, vector<1x1x16x32xf32>
    %113 = vector.shape_cast %112 : vector<1x1x16x32xf32> to vector<16x32xf32>
    %114 = vector.shape_cast %111 : vector<16x32xf32> to vector<1x1x16x32xf32>
    tpu.vector_store %arg7[%c0_62, %c2_63, %c0_64, %c0_65], %114 {strides = array<i32>} : memref<1x3x16x32xf32, #tpu.memory_space<vmem>>, vector<1x1x16x32xf32>,
    return
  }
  func.func @transform_0(%arg0: i32, %arg1: i32, %arg2: i32) -> (i32, i32, i32, i32) {
    %c0_i32 = arith.constant 0 : i32
    %c0_i32_0 = arith.constant 0 : i32
    return %arg0, %c0_i32, %arg1, %arg2 : i32, i32, i32, i32
  }
  func.func @transform_1(%arg0: i32, %arg1: i32, %arg2: i32) -> (i32, i32) {
    %c0_i32 = arith.constant 0 : i32
    %c0_i32_0 = arith.constant 0 : i32
    %c0_i32_1 = arith.constant 0 : i32
    return %c0_i32, %c0_i32_0 : i32, i32
  }
  func.func @transform_2(%arg0: i32, %arg1: i32, %arg2: i32) -> (i32, i32) {
    %c0_i32 = arith.constant 0 : i32
    %c0_i32_0 = arith.constant 0 : i32
    %c0_i32_1 = arith.constant 0 : i32
    return %c0_i32, %c0_i32_0 : i32, i32
  }
  func.func @transform_3(%arg0: i32, %arg1: i32, %arg2: i32) -> (i32, i32, i32) {
    %c0_i32 = arith.constant 0 : i32
    %c0_i32_0 = arith.constant 0 : i32
    %c0_i32_1 = arith.constant 0 : i32
    %c0_i32_2 = arith.constant 0 : i32
    return %c0_i32, %c0_i32_0, %c0_i32_1 : i32, i32, i32
  }
  func.func @transform_4(%arg0: i32, %arg1: i32, %arg2: i32) -> (i32, i32, i32, i32) {
    %c0_i32 = arith.constant 0 : i32
    %c0_i32_0 = arith.constant 0 : i32
    return %arg0, %c0_i32, %arg1, %arg2 : i32, i32, i32, i32
  }
}

</mosaic_0001>

<llo_original>
// kernel: tpu_custom_call.1
$region0: #{tpu_custom_call.1}
  #allocation0 [shape = 'u32[]', space=smem, size = 0x4, offset = 0x4, fixed_abs, tag = 'smem constant byte address 0x4 - core index']
  #allocation1 [shape = 'u32[144,128]{1,0:T(1,128)}', space=vmem, size = 0x12000, scoped, tag = 'internal scratch']
  %s0 = inlined_call_operand.hbm [shape: f32[1,3,16,32], index: 0, kind: input, shape index: {}]
  %s1 = inlined_call_operand.hbm [shape: f32[16,16], index: 1, kind: input, shape index: {}]
  %s2 = inlined_call_operand.hbm [shape: f32[32,32], index: 2, kind: input, shape index: {}]
  %s3 = inlined_call_operand.hbm [shape: f32[4,16,32], index: 3, kind: input, shape index: {}]
  %s4 = inlined_call_operand.hbm [shape: f32[1,3,16,32], index: 4, kind: output, shape index: {}]
  %s5 = sld [smem:[#allocation0]]
  $region42: #{tpu_custom_call.1} parent=0
    _
  %s7 = ssub.s32 1, %s5
  %s8 = scalar_select 0, %s7, %s5
  $region1: #{tpu_custom_call.1} parent=0
    #allocation2 [shape = 'u8[24576]{0}', space=vmem, size = 0x6000, scoped, tag = 'input window, operand 0, single buffered']
    #allocation3 [shape = 's32[1]{0}', space=sflag, size = 0x4, scoped, tag = 'scoped memory for tpu_custom_call.1']
    #allocation4 [shape = 's32[1]{0}', space=sflag, size = 0x4, scoped, tag = 'scoped memory for tpu_custom_call.1']
    #allocation5 [shape = 'u8[8192]{0}', space=vmem, size = 0x2000, scoped, tag = 'input window, operand 1, single buffered']
    #allocation6 [shape = 's32[1]{0}', space=sflag, size = 0x4, scoped, tag = 'scoped memory for tpu_custom_call.1']
    #allocation7 [shape = 'u8[16384]{0}', space=vmem, size = 0x4000, scoped, tag = 'input window, operand 2, single buffered']
    #allocation8 [shape = 'u8[32768]{0}', space=vmem, size = 0x8000, scoped, tag = 'input window, operand 3, single buffered']
    #allocation9 [shape = 's32[1]{0}', space=sflag, size = 0x4, scoped, tag = 'scoped memory for tpu_custom_call.1']
    #allocation10 [shape = 'u8[24576]{0}', space=vmem, size = 0x6000, scoped, tag = 'output window, operand 0, single buffered']
    %9 = vsyncpa [#allocation3], 0
    %10 = vsyncpa [#allocation6], 0
    %11 = vsyncpa [#allocation9], 0
    %12 = vsyncpa [#allocation4], 0
    // Predicated region
    $region2: #{tpu_custom_call.1} parent=1 // pred_check
      _
    $region3: #{tpu_custom_call.1} parent=1 // pred_check_branch
      %14 = sbr.rel (0) target = $region5
    $region4: #{tpu_custom_call.1} parent=1 // pred_region
      %s16 = ssub.s32 768, 768
      %17 = vsyncadd [#allocation3], %s16
      %s18 = sshll.u32 [#allocation2], 4
      %s19 = int_to_ptr.vmem [resolvable:$true] %s18
      %24 = dma.hbm_to_vmem [thread:$0]  %s0, 768, %s19, [#allocation3], 128, 128, 8
    $region5: #{tpu_custom_call.1} parent=1 // pred_fallthru
      _
    // Predicated region
    $region6: #{tpu_custom_call.1} parent=1 // pred_check
      _
    $region7: #{tpu_custom_call.1} parent=1 // pred_check_branch
      %26 = sbr.rel (0) target = $region9
    $region8: #{tpu_custom_call.1} parent=1 // pred_region
      %s28 = ssub.s32 256, 256
      %29 = vsyncadd [#allocation6], %s28
      %s30 = sshll.u32 [#allocation5], 4
      %s31 = int_to_ptr.vmem [resolvable:$true] %s30
      %36 = dma.hbm_to_vmem [thread:$0]  %s1, 256, %s31, [#allocation6], 128, 128, 8
    $region9: #{tpu_custom_call.1} parent=1 // pred_fallthru
      _
    // Predicated region
    $region10: #{tpu_custom_call.1} parent=1 // pred_check
      _
    $region11: #{tpu_custom_call.1} parent=1 // pred_check_branch
      %38 = sbr.rel (0) target = $region13
    $region12: #{tpu_custom_call.1} parent=1 // pred_region
      %s40 = ssub.s32 512, 512
      %41 = vsyncadd [#allocation6], %s40
      %s42 = sshll.u32 [#allocation7], 4
      %s43 = int_to_ptr.vmem [resolvable:$true] %s42
      %48 = dma.hbm_to_vmem [thread:$0]  %s2, 512, %s43, [#allocation6], 128, 128, 8
    $region13: #{tpu_custom_call.1} parent=1 // pred_fallthru
      _
    // Predicated region
    $region14: #{tpu_custom_call.1} parent=1 // pred_check
      _
    $region15: #{tpu_custom_call.1} parent=1 // pred_check_branch
      %50 = sbr.rel (0) target = $region17
    $region16: #{tpu_custom_call.1} parent=1 // pred_region
      %s52 = ssub.s32 1024, 1024
      %53 = vsyncadd [#allocation9], %s52
      %s54 = sshll.u32 [#allocation8], 4
      %s55 = int_to_ptr.vmem [resolvable:$true] %s54
      %60 = dma.hbm_to_vmem [thread:$0]  %s3, 1024, %s55, [#allocation9], 128, 128, 8
    $region17: #{tpu_custom_call.1} parent=1 // pred_fallthru
      _
    // Predicated region
    $region18: #{tpu_custom_call.1} parent=1 // pred_check
      _
    $region19: #{tpu_custom_call.1} parent=1 // pred_check_branch
      %62 = sbr.rel (0) target = $region21
    $region20: #{tpu_custom_call.1} parent=1 // pred_region
      %63 = dma.done [#allocation3], 768
    $region21: #{tpu_custom_call.1} parent=1 // pred_fallthru
      _
    // Predicated region
    $region22: #{tpu_custom_call.1} parent=1 // pred_check
      _
    $region23: #{tpu_custom_call.1} parent=1 // pred_check_branch
      %65 = sbr.rel (0) target = $region25
    $region24: #{tpu_custom_call.1} parent=1 // pred_region
      %66 = dma.done [#allocation6], 256
    $region25: #{tpu_custom_call.1} parent=1 // pred_fallthru
      _
    // Predicated region
    $region26: #{tpu_custom_call.1} parent=1 // pred_check
      _
    $region27: #{tpu_custom_call.1} parent=1 // pred_check_branch
      %68 = sbr.rel (0) target = $region29
    $region28: #{tpu_custom_call.1} parent=1 // pred_region
      %69 = dma.done [#allocation6], 512
    $region29: #{tpu_custom_call.1} parent=1 // pred_fallthru
      _
    // Predicated region
    $region30: #{tpu_custom_call.1} parent=1 // pred_check
      _
    $region31: #{tpu_custom_call.1} parent=1 // pred_check_branch
      %71 = sbr.rel (0) target = $region33
    $region32: #{tpu_custom_call.1} parent=1 // pred_region
      %72 = dma.done [#allocation9], 1024
    $region33: #{tpu_custom_call.1} parent=1 // pred_fallthru
      _
    %v73 = vld [vmem:[#allocation2] sm:$0xff]
    %v74 = vld [vmem:[#allocation2 + $0x8] sm:$0xff]
    %v75 = vld [vmem:[#allocation2 + $0x10] sm:$0xff]
    %v76 = vld [vmem:[#allocation2 + $0x18] sm:$0xff]
    %v77 = vld [vmem:[#allocation2 + $0x20] sm:$0xff]
    %v78 = vld [vmem:[#allocation2 + $0x28] sm:$0xff]
    %v79 = vmul.f32 %v73, 255.0
    %v80 = vmul.f32 %v74, 255.0
    %v81 = vmul.f32 %v75, 255.0
    %v82 = vmul.f32 %v76, 255.0
    %v83 = vmul.f32 %v77, 255.0
    %v84 = vmul.f32 %v78, 255.0
    %v85 = vmax.f32 %v79, 0.0
    %v86 = vmax.f32 %v80, 0.0
    %v87 = vmax.f32 %v81, 0.0
    %v88 = vmax.f32 %v82, 0.0
    %v89 = vmax.f32 %v83, 0.0
    %v90 = vmax.f32 %v84, 0.0
    %v91 = vmin.f32 %v85, 255.0
    %v92 = vmin.f32 %v86, 255.0
    %v93 = vmin.f32 %v87, 255.0
    %v94 = vmin.f32 %v88, 255.0
    %v95 = vmin.f32 %v89, 255.0
    %v96 = vmin.f32 %v90, 255.0
    %v97 = vfloor.f32 %v91
    %v98 = vfloor.f32 %v92
    %v99 = vfloor.f32 %v93
    %v100 = vfloor.f32 %v94
    %v101 = vfloor.f32 %v95
    %v102 = vfloor.f32 %v96
    %v103 = vmul.f32 %v97, 0.299
    %v104 = vmul.f32 %v98, 0.299
    %v105 = vmul.f32 %v99, 0.587
    %v106 = vmul.f32 %v100, 0.587
    %v107 = vadd.f32 %v103, %v105
    %v108 = vadd.f32 %v104, %v106
    %v109 = vmul.f32 %v101, 0.114
    %v110 = vmul.f32 %v102, 0.114
    %v111 = vadd.f32 %v107, %v109
    %v112 = vadd.f32 %v108, %v110
    %v113 = vsub.f32 %v111, 128.0
    %v114 = vsub.f32 %v112, 128.0
    %v115 = vmul.f32 %v97, -0.168736
    %v116 = vmul.f32 %v98, -0.168736
    %v117 = vmul.f32 %v99, 0.331264
    %v118 = vmul.f32 %v100, 0.331264
    %v119 = vsub.f32 %v115, %v117
    %v120 = vsub.f32 %v116, %v118
    %v121 = vmul.f32 %v101, 0.5
    %v122 = vmul.f32 %v102, 0.5
    %v123 = vadd.f32 %v119, %v121
    %v124 = vadd.f32 %v120, %v122
    %v125 = vmul.f32 %v97, 0.5
    %v126 = vmul.f32 %v98, 0.5
    %v127 = vmul.f32 %v99, 0.418688
    %v128 = vmul.f32 %v100, 0.418688
    %v129 = vsub.f32 %v125, %v127
    %v130 = vsub.f32 %v126, %v128
    %v131 = vmul.f32 %v101, 0.081312
    %v132 = vmul.f32 %v102, 0.081312
    %v133 = vsub.f32 %v129, %v131
    %v134 = vsub.f32 %v130, %v132
    %v135 = vld [vmem:[#allocation5] sm:$0xff]
    %v136 = vld [vmem:[#allocation5 + $0x8] sm:$0xff]
    %v137 = vld [vmem:[#allocation7] sm:$0xff]
    %v138 = vld [vmem:[#allocation7 + $0x8] sm:$0xff]
    %v139 = vld [vmem:[#allocation7 + $0x10] sm:$0xff]
    %v140 = vld [vmem:[#allocation7 + $0x18] sm:$0xff]
    %v141 = vld [vmem:[#allocation8] sm:$0xff]
    %v142 = vld [vmem:[#allocation8 + $0x8] sm:$0xff]
    %s143 = scalar_lea.vmem [#allocation8], 16
    %v144 = vld [vmem:[%s143] sm:$0xff]
    %v145 = vld [vmem:[%s143 + $0x8] sm:$0xff]
    %s146 = scalar_lea.vmem [#allocation8], 32
    %v147 = vld [vmem:[%s146] sm:$0xff]
    %v148 = vld [vmem:[%s146 + $0x8] sm:$0xff]
    %s149 = scalar_lea.vmem [#allocation8], 48
    %v150 = vld [vmem:[%s149] sm:$0xff]
    %v151 = vld [vmem:[%s149 + $0x8] sm:$0xff]
    %vm152 = vcmask 130048
    %v154 = vsel %vm152, %v135, 0
    %v157 = vsel %vm152, %v136, 0
    %159 = vmatprep.subr.mxu0 0.0
    %160 = vmatpush1.msra.mxu0 %v113
    %161 = vmatprep.subr.mxu0 0.0
    %162 = vmatpush1.msra.mxu0 %v114
    %163 = vmatprep.subr.mxu0 0.0
    %164 = vmatpush1.msra.mxu0 0.0
    %165 = vmatprep.subr.mxu0 0.0
    %166 = vmatpush1.msra.mxu0 0.0
    %167 = vmatprep.subr.mxu0 0.0
    %168 = vmatpush1.msra.mxu0 0.0
    %169 = vmatprep.subr.mxu0 0.0
    %170 = vmatpush1.msra.mxu0 0.0
    %171 = vmatprep.subr.mxu0 0.0
    %172 = vmatpush1.msra.mxu0 0.0
    %173 = vmatprep.subr.mxu0 0.0
    %174 = vmatpush1.msra.mxu0 0.0
    %175 = vmatprep.subr.mxu0 0.0
    %176 = vmatpush1.msra.mxu0 0.0
    %177 = vmatprep.subr.mxu0 0.0
    %178 = vmatpush1.msra.mxu0 0.0
    %179 = vmatprep.subr.mxu0 0.0
    %180 = vmatpush1.msra.mxu0 0.0
    %181 = vmatprep.subr.mxu0 0.0
    %182 = vmatpush1.msra.mxu0 0.0
    %183 = vmatprep.subr.mxu0 0.0
    %184 = vmatpush1.msra.mxu0 0.0
    %185 = vmatprep.subr.mxu0 0.0
    %186 = vmatpush1.msra.mxu0 0.0
    %187 = vmatprep.subr.mxu0 0.0
    %188 = vmatpush1.msra.mxu0 0.0
    %189 = vmatprep.subr.mxu0 0.0
    %190 = vmatpush1.msra.mxu0 0.0
    %191 = vmatprep.subr.mxu0 0.0
    %192 = vmatpush1.msra.mxu0 0.0
    %193 = vmatprep.subr.mxu0 0.0
    %194 = vmatpush1.msra.mxu0 0.0
    %195 = vmatprep.subr.mxu0 0.0
    %196 = vmatpush1.msra.mxu0 0.0
    %197 = vmatprep.subr.mxu0 0.0
    %198 = vmatpush1.msra.mxu0 0.0
    %199 = vmatprep.subr.mxu0 0.0
    %200 = vmatpush1.msra.mxu0 0.0
    %201 = vmatprep.subr.mxu0 0.0
    %202 = vmatpush1.msra.mxu0 0.0
    %203 = vmatprep.subr.mxu0 0.0
    %204 = vmatpush1.msra.mxu0 0.0
    %205 = vmatprep.subr.mxu0 0.0
    %206 = vmatpush1.msra.mxu0 0.0
    %207 = vmatprep.subr.mxu0 0.0
    %208 = vmatpush1.msra.mxu0 0.0
    %209 = vmatprep.subr.mxu0 0.0
    %210 = vmatpush1.msra.mxu0 0.0
    %211 = vmatprep.subr.mxu0 0.0
    %212 = vmatpush1.msra.mxu0 0.0
    %213 = vmatprep.subr.mxu0 0.0
    %214 = vmatpush1.msra.mxu0 0.0
    %215 = vmatprep.subr.mxu0 0.0
    %216 = vmatpush1.msra.mxu0 0.0
    %217 = vmatprep.subr.mxu0 0.0
    %218 = vmatpush1.msra.mxu0 0.0
    %219 = vmatprep.subr.mxu0 0.0
    %220 = vmatpush1.msra.mxu0 0.0
    %221 = vmatprep.subr.mxu0 0.0
    %222 = vmatpush1.msra.mxu0 0.0
    %223 = vmatprep.mubr.f32.mxu0 0.0
    %224 = vmatmul.mubr.f32.gmra.mrb[0].mxu0 %v154
    %v225 = vpop.f32.mrb[0].mxu0
    %v226 = vadd.f32 0.0, %v225
    %v227 = vpop.f32.mrb[0].mxu0
    %228 = vmatprep.mubr.f32.mxu0 0.0
    %229 = vmatmul.mubr.f32.gmra.mrb[0].mxu0 %v157
    %v230 = vpop.f32.mrb[0].mxu0
    %v231 = vadd.f32 0.0, %v230
    %v232 = vpop.f32.mrb[0].mxu0
    %233 = vdwg.mxu0
    %vm234 = vcmask 261120
    %v236 = vsel %vm234, %v226, 0
    %v239 = vsel %vm234, %v231, 0
    %v242 = vsel %vm234, %v137, 0
    %v245 = vsel %vm234, %v138, 0
    %v248 = vsel %vm234, %v139, 0
    %v251 = vsel %vm234, %v140, 0
    %253 = vmatprep.subr.mxu0 0.0
    %254 = vmatpush1.xpose.msra.mxu0 %v242
    %255 = vmatprep.subr.mxu0 0.0
    %256 = vmatpush1.xpose.msra.mxu0 %v245
    %257 = vmatprep.subr.mxu0 0.0
    %258 = vmatpush1.xpose.msra.mxu0 %v248
    %259 = vmatprep.subr.mxu0 0.0
    %260 = vmatpush1.xpose.msra.mxu0 %v251
    %261 = vmatprep.subr.mxu0 0.0
    %262 = vmatpush1.xpose.msra.mxu0 0.0
    %263 = vmatprep.subr.mxu0 0.0
    %264 = vmatpush1.xpose.msra.mxu0 0.0
    %265 = vmatprep.subr.mxu0 0.0
    %266 = vmatpush1.xpose.msra.mxu0 0.0
    %267 = vmatprep.subr.mxu0 0.0
    %268 = vmatpush1.xpose.msra.mxu0 0.0
    %269 = vmatprep.subr.mxu0 0.0
    %270 = vmatpush1.xpose.msra.mxu0 0.0
    %271 = vmatprep.subr.mxu0 0.0
    %272 = vmatpush1.xpose.msra.mxu0 0.0
    %273 = vmatprep.subr.mxu0 0.0
    %274 = vmatpush1.xpose.msra.mxu0 0.0
    %275 = vmatprep.subr.mxu0 0.0
    %276 = vmatpush1.xpose.msra.mxu0 0.0
    %277 = vmatprep.subr.mxu0 0.0
    %278 = vmatpush1.xpose.msra.mxu0 0.0
    %279 = vmatprep.subr.mxu0 0.0
    %280 = vmatpush1.xpose.msra.mxu0 0.0
    %281 = vmatprep.subr.mxu0 0.0
    %282 = vmatpush1.xpose.msra.mxu0 0.0
    %283 = vmatprep.subr.mxu0 0.0
    %284 = vmatpush1.xpose.msra.mxu0 0.0
    %285 = vmatprep.subr.mxu0 0.0
    %286 = vmatpush1.xpose.msra.mxu0 0.0
    %287 = vmatprep.subr.mxu0 0.0
    %288 = vmatpush1.xpose.msra.mxu0 0.0
    %289 = vmatprep.subr.mxu0 0.0
    %290 = vmatpush1.xpose.msra.mxu0 0.0
    %291 = vmatprep.subr.mxu0 0.0
    %292 = vmatpush1.xpose.msra.mxu0 0.0
    %293 = vmatprep.subr.mxu0 0.0
    %294 = vmatpush1.xpose.msra.mxu0 0.0
    %295 = vmatprep.subr.mxu0 0.0
    %296 = vmatpush1.xpose.msra.mxu0 0.0
    %297 = vmatprep.subr.mxu0 0.0
    %298 = vmatpush1.xpose.msra.mxu0 0.0
    %299 = vmatprep.subr.mxu0 0.0
    %300 = vmatpush1.xpose.msra.mxu0 0.0
    %301 = vmatprep.subr.mxu0 0.0
    %302 = vmatpush1.xpose.msra.mxu0 0.0
    %303 = vmatprep.subr.mxu0 0.0
    %304 = vmatpush1.xpose.msra.mxu0 0.0
    %305 = vmatprep.subr.mxu0 0.0
    %306 = vmatpush1.xpose.msra.mxu0 0.0
    %307 = vmatprep.subr.mxu0 0.0
    %308 = vmatpush1.xpose.msra.mxu0 0.0
    %309 = vmatprep.subr.mxu0 0.0
    %310 = vmatpush1.xpose.msra.mxu0 0.0
    %311 = vmatprep.subr.mxu0 0.0
    %312 = vmatpush1.xpose.msra.mxu0 0.0
    %313 = vmatprep.subr.mxu0 0.0
    %314 = vmatpush1.xpose.msra.mxu0 0.0
    %315 = vmatprep.subr.mxu0 0.0
    %316 = vmatpush1.xpose.msra.mxu0 0.0
    %317 = vmatprep.mubr.f32.mxu0 0.0
    %318 = vmatmul.mubr.f32.gmra.mrb[0].mxu0 %v236
    %v319 = vpop.f32.mrb[0].mxu0
    %v320 = vadd.f32 0.0, %v319
    %v321 = vpop.f32.mrb[0].mxu0
    %322 = vmatprep.mubr.f32.mxu0 0.0
    %323 = vmatmul.mubr.f32.gmra.mrb[0].mxu0 %v239
    %v324 = vpop.f32.mrb[0].mxu0
    %v325 = vadd.f32 0.0, %v324
    %v326 = vpop.f32.mrb[0].mxu0
    %327 = vdwg.mxu0
    %v328 = vmul.f32 %v320, %v144
    %v329 = vmul.f32 %v325, %v145
    %v330 = vround.ne.pseudo %v328
    %v331 = vround.ne.pseudo %v329
    %v332 = vmul.f32 %v330, %v141
    %v333 = vmul.f32 %v331, %v142
    %334 = vxpose.xlu0.b32.start [1/16] %v135, 128
    %335 = vxpose.xlu0.b32.cont [2/16] %v136, 128
    %336 = vxpose.xlu0.b32.cont [3/16] 0.0, 128
    %337 = vxpose.xlu0.b32.cont [4/16] 0.0, 128
    %338 = vxpose.xlu0.b32.cont [5/16] 0.0, 128
    %339 = vxpose.xlu0.b32.cont [6/16] 0.0, 128
    %340 = vxpose.xlu0.b32.cont [7/16] 0.0, 128
    %341 = vxpose.xlu0.b32.cont [8/16] 0.0, 128
    %342 = vxpose.xlu0.b32.cont [9/16] 0.0, 128
    %343 = vxpose.xlu0.b32.cont [10/16] 0.0, 128
    %344 = vxpose.xlu0.b32.cont [11/16] 0.0, 128
    %345 = vxpose.xlu0.b32.cont [12/16] 0.0, 128
    %346 = vxpose.xlu0.b32.cont [13/16] 0.0, 128
    %347 = vxpose.xlu0.b32.cont [14/16] 0.0, 128
    %348 = vxpose.xlu0.b32.cont [15/16] 0.0, 128
    %349 = vxpose.xlu0.b32.end [16/16] 0.0, 128
    %v350 = vpop.trf.xlu0
    %v351 = vpop.trf.xlu0
    %v352 = vpop.trf.xlu0
    %v353 = vpop.trf.xlu0
    %v354 = vpop.trf.xlu0
    %v355 = vpop.trf.xlu0
    %v356 = vpop.trf.xlu0
    %v357 = vpop.trf.xlu0
    %v358 = vpop.trf.xlu0
    %v359 = vpop.trf.xlu0
    %v360 = vpop.trf.xlu0
    %v361 = vpop.trf.xlu0
    %v362 = vpop.trf.xlu0
    %v363 = vpop.trf.xlu0
    %v364 = vpop.trf.xlu0
    %v365 = vpop.trf.xlu0
    %v367 = vsel %vm152, %v350, 0
    %v370 = vsel %vm152, %v351, 0
    %372 = vmatprep.subr.mxu0 0.0
    %373 = vmatpush1.msra.mxu0 %v332
    %374 = vmatprep.subr.mxu0 0.0
    %375 = vmatpush1.msra.mxu0 %v333
    %376 = vmatprep.subr.mxu0 0.0
    %377 = vmatpush1.msra.mxu0 0.0
    %378 = vmatprep.subr.mxu0 0.0
    %379 = vmatpush1.msra.mxu0 0.0
    %380 = vmatprep.subr.mxu0 0.0
    %381 = vmatpush1.msra.mxu0 0.0
    %382 = vmatprep.subr.mxu0 0.0
    %383 = vmatpush1.msra.mxu0 0.0
    %384 = vmatprep.subr.mxu0 0.0
    %385 = vmatpush1.msra.mxu0 0.0
    %386 = vmatprep.subr.mxu0 0.0
    %387 = vmatpush1.msra.mxu0 0.0
    %388 = vmatprep.subr.mxu0 0.0
    %389 = vmatpush1.msra.mxu0 0.0
    %390 = vmatprep.subr.mxu0 0.0
    %391 = vmatpush1.msra.mxu0 0.0
    %392 = vmatprep.subr.mxu0 0.0
    %393 = vmatpush1.msra.mxu0 0.0
    %394 = vmatprep.subr.mxu0 0.0
    %395 = vmatpush1.msra.mxu0 0.0
    %396 = vmatprep.subr.mxu0 0.0
    %397 = vmatpush1.msra.mxu0 0.0
    %398 = vmatprep.subr.mxu0 0.0
    %399 = vmatpush1.msra.mxu0 0.0
    %400 = vmatprep.subr.mxu0 0.0
    %401 = vmatpush1.msra.mxu0 0.0
    %402 = vmatprep.subr.mxu0 0.0
    %403 = vmatpush1.msra.mxu0 0.0
    %404 = vmatprep.subr.mxu0 0.0
    %405 = vmatpush1.msra.mxu0 0.0
    %406 = vmatprep.subr.mxu0 0.0
    %407 = vmatpush1.msra.mxu0 0.0
    %408 = vmatprep.subr.mxu0 0.0
    %409 = vmatpush1.msra.mxu0 0.0
    %410 = vmatprep.subr.mxu0 0.0
    %411 = vmatpush1.msra.mxu0 0.0
    %412 = vmatprep.subr.mxu0 0.0
    %413 = vmatpush1.msra.mxu0 0.0
    %414 = vmatprep.subr.mxu0 0.0
    %415 = vmatpush1.msra.mxu0 0.0
    %416 = vmatprep.subr.mxu0 0.0
    %417 = vmatpush1.msra.mxu0 0.0
    %418 = vmatprep.subr.mxu0 0.0
    %419 = vmatpush1.msra.mxu0 0.0
    %420 = vmatprep.subr.mxu0 0.0
    %421 = vmatpush1.msra.mxu0 0.0
    %422 = vmatprep.subr.mxu0 0.0
    %423 = vmatpush1.msra.mxu0 0.0
    %424 = vmatprep.subr.mxu0 0.0
    %425 = vmatpush1.msra.mxu0 0.0
    %426 = vmatprep.subr.mxu0 0.0
    %427 = vmatpush1.msra.mxu0 0.0
    %428 = vmatprep.subr.mxu0 0.0
    %429 = vmatpush1.msra.mxu0 0.0
    %430 = vmatprep.subr.mxu0 0.0
    %431 = vmatpush1.msra.mxu0 0.0
    %432 = vmatprep.subr.mxu0 0.0
    %433 = vmatpush1.msra.mxu0 0.0
    %434 = vmatprep.subr.mxu0 0.0
    %435 = vmatpush1.msra.mxu0 0.0
    %436 = vmatprep.mubr.f32.mxu0 0.0
    %437 = vmatmul.mubr.f32.gmra.mrb[0].mxu0 %v367
    %v438 = vpop.f32.mrb[0].mxu0
    %v439 = vadd.f32 0.0, %v438
    %v440 = vpop.f32.mrb[0].mxu0
    %441 = vmatprep.mubr.f32.mxu0 0.0
    %442 = vmatmul.mubr.f32.gmra.mrb[0].mxu0 %v370
    %v443 = vpop.f32.mrb[0].mxu0
    %v444 = vadd.f32 0.0, %v443
    %v445 = vpop.f32.mrb[0].mxu0
    %446 = vdwg.mxu0
    %v448 = vsel %vm234, %v439, 0
    %v451 = vsel %vm234, %v444, 0
    %453 = vmatprep.subr.mxu0 0.0
    %454 = vmatpush1.msra.mxu0 %v137
    %455 = vmatprep.subr.mxu0 0.0
    %456 = vmatpush1.msra.mxu0 %v138
    %457 = vmatprep.subr.mxu0 0.0
    %458 = vmatpush1.msra.mxu0 %v139
    %459 = vmatprep.subr.mxu0 0.0
    %460 = vmatpush1.msra.mxu0 %v140
    %461 = vmatprep.subr.mxu0 0.0
    %462 = vmatpush1.msra.mxu0 0.0
    %463 = vmatprep.subr.mxu0 0.0
    %464 = vmatpush1.msra.mxu0 0.0
    %465 = vmatprep.subr.mxu0 0.0
    %466 = vmatpush1.msra.mxu0 0.0
    %467 = vmatprep.subr.mxu0 0.0
    %468 = vmatpush1.msra.mxu0 0.0
    %469 = vmatprep.subr.mxu0 0.0
    %470 = vmatpush1.msra.mxu0 0.0
    %471 = vmatprep.subr.mxu0 0.0
    %472 = vmatpush1.msra.mxu0 0.0
    %473 = vmatprep.subr.mxu0 0.0
    %474 = vmatpush1.msra.mxu0 0.0
    %475 = vmatprep.subr.mxu0 0.0
    %476 = vmatpush1.msra.mxu0 0.0
    %477 = vmatprep.subr.mxu0 0.0
    %478 = vmatpush1.msra.mxu0 0.0
    %479 = vmatprep.subr.mxu0 0.0
    %480 = vmatpush1.msra.mxu0 0.0
    %481 = vmatprep.subr.mxu0 0.0
    %482 = vmatpush1.msra.mxu0 0.0
    %483 = vmatprep.subr.mxu0 0.0
    %484 = vmatpush1.msra.mxu0 0.0
    %485 = vmatprep.subr.mxu0 0.0
    %486 = vmatpush1.msra.mxu0 0.0
    %487 = vmatprep.subr.mxu0 0.0
    %488 = vmatpush1.msra.mxu0 0.0
    %489 = vmatprep.subr.mxu0 0.0
    %490 = vmatpush1.msra.mxu0 0.0
    %491 = vmatprep.subr.mxu0 0.0
    %492 = vmatpush1.msra.mxu0 0.0
    %493 = vmatprep.subr.mxu0 0.0
    %494 = vmatpush1.msra.mxu0 0.0
    %495 = vmatprep.subr.mxu0 0.0
    %496 = vmatpush1.msra.mxu0 0.0
    %497 = vmatprep.subr.mxu0 0.0
    %498 = vmatpush1.msra.mxu0 0.0
    %499 = vmatprep.subr.mxu0 0.0
    %500 = vmatpush1.msra.mxu0 0.0
    %501 = vmatprep.subr.mxu0 0.0
    %502 = vmatpush1.msra.mxu0 0.0
    %503 = vmatprep.subr.mxu0 0.0
    %504 = vmatpush1.msra.mxu0 0.0
    %505 = vmatprep.subr.mxu0 0.0
    %506 = vmatpush1.msra.mxu0 0.0
    %507 = vmatprep.subr.mxu0 0.0
    %508 = vmatpush1.msra.mxu0 0.0
    %509 = vmatprep.subr.mxu0 0.0
    %510 = vmatpush1.msra.mxu0 0.0
    %511 = vmatprep.subr.mxu0 0.0
    %512 = vmatpush1.msra.mxu0 0.0
    %513 = vmatprep.subr.mxu0 0.0
    %514 = vmatpush1.msra.mxu0 0.0
    %515 = vmatprep.subr.mxu0 0.0
    %516 = vmatpush1.msra.mxu0 0.0
    %517 = vmatprep.mubr.f32.mxu0 0.0
    %518 = vmatmul.mubr.f32.gmra.mrb[0].mxu0 %v448
    %v519 = vpop.f32.mrb[0].mxu0
    %v520 = vadd.f32 128.0, %v519
    %v521 = vpop.f32.mrb[0].mxu0
    %522 = vmatprep.mubr.f32.mxu0 0.0
    %523 = vmatmul.mubr.f32.gmra.mrb[0].mxu0 %v451
    %v524 = vpop.f32.mrb[0].mxu0
    %v525 = vadd.f32 128.0, %v524
    %v526 = vpop.f32.mrb[0].mxu0
    %527 = vdwg.mxu0
    %528 = vmatprep.subr.mxu0 0.0
    %529 = vmatpush1.msra.mxu0 %v123
    %530 = vmatprep.subr.mxu0 0.0
    %531 = vmatpush1.msra.mxu0 %v124
    %532 = vmatprep.subr.mxu0 0.0
    %533 = vmatpush1.msra.mxu0 0.0
    %534 = vmatprep.subr.mxu0 0.0
    %535 = vmatpush1.msra.mxu0 0.0
    %536 = vmatprep.subr.mxu0 0.0
    %537 = vmatpush1.msra.mxu0 0.0
    %538 = vmatprep.subr.mxu0 0.0
    %539 = vmatpush1.msra.mxu0 0.0
    %540 = vmatprep.subr.mxu0 0.0
    %541 = vmatpush1.msra.mxu0 0.0
    %542 = vmatprep.subr.mxu0 0.0
    %543 = vmatpush1.msra.mxu0 0.0
    %544 = vmatprep.subr.mxu0 0.0
    %545 = vmatpush1.msra.mxu0 0.0
    %546 = vmatprep.subr.mxu0 0.0
    %547 = vmatpush1.msra.mxu0 0.0
    %548 = vmatprep.subr.mxu0 0.0
    %549 = vmatpush1.msra.mxu0 0.0
    %550 = vmatprep.subr.mxu0 0.0
    %551 = vmatpush1.msra.mxu0 0.0
    %552 = vmatprep.subr.mxu0 0.0
    %553 = vmatpush1.msra.mxu0 0.0
    %554 = vmatprep.subr.mxu0 0.0
    %555 = vmatpush1.msra.mxu0 0.0
    %556 = vmatprep.subr.mxu0 0.0
    %557 = vmatpush1.msra.mxu0 0.0
    %558 = vmatprep.subr.mxu0 0.0
    %559 = vmatpush1.msra.mxu0 0.0
    %560 = vmatprep.subr.mxu0 0.0
    %561 = vmatpush1.msra.mxu0 0.0
    %562 = vmatprep.subr.mxu0 0.0
    %563 = vmatpush1.msra.mxu0 0.0
    %564 = vmatprep.subr.mxu0 0.0
    %565 = vmatpush1.msra.mxu0 0.0
    %566 = vmatprep.subr.mxu0 0.0
    %567 = vmatpush1.msra.mxu0 0.0
    %568 = vmatprep.subr.mxu0 0.0
    %569 = vmatpush1.msra.mxu0 0.0
    %570 = vmatprep.subr.mxu0 0.0
    %571 = vmatpush1.msra.mxu0 0.0
    %572 = vmatprep.subr.mxu0 0.0
    %573 = vmatpush1.msra.mxu0 0.0
    %574 = vmatprep.subr.mxu0 0.0
    %575 = vmatpush1.msra.mxu0 0.0
    %576 = vmatprep.subr.mxu0 0.0
    %577 = vmatpush1.msra.mxu0 0.0
    %578 = vmatprep.subr.mxu0 0.0
    %579 = vmatpush1.msra.mxu0 0.0
    %580 = vmatprep.subr.mxu0 0.0
    %581 = vmatpush1.msra.mxu0 0.0
    %582 = vmatprep.subr.mxu0 0.0
    %583 = vmatpush1.msra.mxu0 0.0
    %584 = vmatprep.subr.mxu0 0.0
    %585 = vmatpush1.msra.mxu0 0.0
    %586 = vmatprep.subr.mxu0 0.0
    %587 = vmatpush1.msra.mxu0 0.0
    %588 = vmatprep.subr.mxu0 0.0
    %589 = vmatpush1.msra.mxu0 0.0
    %590 = vmatprep.subr.mxu0 0.0
    %591 = vmatpush1.msra.mxu0 0.0
    %592 = vmatprep.mubr.f32.mxu0 0.0
    %593 = vmatmul.mubr.f32.gmra.mrb[0].mxu0 %v154
    %v594 = vpop.f32.mrb[0].mxu0
    %v595 = vadd.f32 0.0, %v594
    %v596 = vpop.f32.mrb[0].mxu0
    %597 = vmatprep.mubr.f32.mxu0 0.0
    %598 = vmatmul.mubr.f32.gmra.mrb[0].mxu0 %v157
    %v599 = vpop.f32.mrb[0].mxu0
    %v600 = vadd.f32 0.0, %v599
    %v601 = vpop.f32.mrb[0].mxu0
    %602 = vdwg.mxu0
    %v604 = vsel %vm234, %v595, 0
    %v607 = vsel %vm234, %v600, 0
    %609 = vmatprep.subr.mxu0 0.0
    %610 = vmatpush1.xpose.msra.mxu0 %v242
    %611 = vmatprep.subr.mxu0 0.0
    %612 = vmatpush1.xpose.msra.mxu0 %v245
    %613 = vmatprep.subr.mxu0 0.0
    %614 = vmatpush1.xpose.msra.mxu0 %v248
    %615 = vmatprep.subr.mxu0 0.0
    %616 = vmatpush1.xpose.msra.mxu0 %v251
    %617 = vmatprep.subr.mxu0 0.0
    %618 = vmatpush1.xpose.msra.mxu0 0.0
    %619 = vmatprep.subr.mxu0 0.0
    %620 = vmatpush1.xpose.msra.mxu0 0.0
    %621 = vmatprep.subr.mxu0 0.0
    %622 = vmatpush1.xpose.msra.mxu0 0.0
    %623 = vmatprep.subr.mxu0 0.0
    %624 = vmatpush1.xpose.msra.mxu0 0.0
    %625 = vmatprep.subr.mxu0 0.0
    %626 = vmatpush1.xpose.msra.mxu0 0.0
    %627 = vmatprep.subr.mxu0 0.0
    %628 = vmatpush1.xpose.msra.mxu0 0.0
    %629 = vmatprep.subr.mxu0 0.0
    %630 = vmatpush1.xpose.msra.mxu0 0.0
    %631 = vmatprep.subr.mxu0 0.0
    %632 = vmatpush1.xpose.msra.mxu0 0.0
    %633 = vmatprep.subr.mxu0 0.0
    %634 = vmatpush1.xpose.msra.mxu0 0.0
    %635 = vmatprep.subr.mxu0 0.0
    %636 = vmatpush1.xpose.msra.mxu0 0.0
    %637 = vmatprep.subr.mxu0 0.0
    %638 = vmatpush1.xpose.msra.mxu0 0.0
    %639 = vmatprep.subr.mxu0 0.0
    %640 = vmatpush1.xpose.msra.mxu0 0.0
    %641 = vmatprep.subr.mxu0 0.0
    %642 = vmatpush1.xpose.msra.mxu0 0.0
    %643 = vmatprep.subr.mxu0 0.0
    %644 = vmatpush1.xpose.msra.mxu0 0.0
    %645 = vmatprep.subr.mxu0 0.0
    %646 = vmatpush1.xpose.msra.mxu0 0.0
    %647 = vmatprep.subr.mxu0 0.0
    %648 = vmatpush1.xpose.msra.mxu0 0.0
    %649 = vmatprep.subr.mxu0 0.0
    %650 = vmatpush1.xpose.msra.mxu0 0.0
    %651 = vmatprep.subr.mxu0 0.0
    %652 = vmatpush1.xpose.msra.mxu0 0.0
    %653 = vmatprep.subr.mxu0 0.0
    %654 = vmatpush1.xpose.msra.mxu0 0.0
    %655 = vmatprep.subr.mxu0 0.0
    %656 = vmatpush1.xpose.msra.mxu0 0.0
    %657 = vmatprep.subr.mxu0 0.0
    %658 = vmatpush1.xpose.msra.mxu0 0.0
    %659 = vmatprep.subr.mxu0 0.0
    %660 = vmatpush1.xpose.msra.mxu0 0.0
    %661 = vmatprep.subr.mxu0 0.0
    %662 = vmatpush1.xpose.msra.mxu0 0.0
    %663 = vmatprep.subr.mxu0 0.0
    %664 = vmatpush1.xpose.msra.mxu0 0.0
    %665 = vmatprep.subr.mxu0 0.0
    %666 = vmatpush1.xpose.msra.mxu0 0.0
    %667 = vmatprep.subr.mxu0 0.0
    %668 = vmatpush1.xpose.msra.mxu0 0.0
    %669 = vmatprep.subr.mxu0 0.0
    %670 = vmatpush1.xpose.msra.mxu0 0.0
    %671 = vmatprep.subr.mxu0 0.0
    %672 = vmatpush1.xpose.msra.mxu0 0.0
    %673 = vmatprep.mubr.f32.mxu0 0.0
    %674 = vmatmul.mubr.f32.gmra.mrb[0].mxu0 %v604
    %v675 = vpop.f32.mrb[0].mxu0
    %v676 = vadd.f32 0.0, %v675
    %v677 = vpop.f32.mrb[0].mxu0
    %678 = vmatprep.mubr.f32.mxu0 0.0
    %679 = vmatmul.mubr.f32.gmra.mrb[0].mxu0 %v607
    %v680 = vpop.f32.mrb[0].mxu0
    %v681 = vadd.f32 0.0, %v680
    %v682 = vpop.f32.mrb[0].mxu0
    %683 = vdwg.mxu0
    %v684 = vmul.f32 %v676, %v150
    %v685 = vmul.f32 %v681, %v151
    %v686 = vround.ne.pseudo %v684
    %v687 = vround.ne.pseudo %v685
    %v688 = vmul.f32 %v686, %v147
    %v689 = vmul.f32 %v687, %v148
    %690 = vmatprep.subr.mxu0 0.0
    %691 = vmatpush1.msra.mxu0 %v688
    %692 = vmatprep.subr.mxu0 0.0
    %693 = vmatpush1.msra.mxu0 %v689
    %694 = vmatprep.subr.mxu0 0.0
    %695 = vmatpush1.msra.mxu0 0.0
    %696 = vmatprep.subr.mxu0 0.0
    %697 = vmatpush1.msra.mxu0 0.0
    %698 = vmatprep.subr.mxu0 0.0
    %699 = vmatpush1.msra.mxu0 0.0
    %700 = vmatprep.subr.mxu0 0.0
    %701 = vmatpush1.msra.mxu0 0.0
    %702 = vmatprep.subr.mxu0 0.0
    %703 = vmatpush1.msra.mxu0 0.0
    %704 = vmatprep.subr.mxu0 0.0
    %705 = vmatpush1.msra.mxu0 0.0
    %706 = vmatprep.subr.mxu0 0.0
    %707 = vmatpush1.msra.mxu0 0.0
    %708 = vmatprep.subr.mxu0 0.0
    %709 = vmatpush1.msra.mxu0 0.0
    %710 = vmatprep.subr.mxu0 0.0
    %711 = vmatpush1.msra.mxu0 0.0
    %712 = vmatprep.subr.mxu0 0.0
    %713 = vmatpush1.msra.mxu0 0.0
    %714 = vmatprep.subr.mxu0 0.0
    %715 = vmatpush1.msra.mxu0 0.0
    %716 = vmatprep.subr.mxu0 0.0
    %717 = vmatpush1.msra.mxu0 0.0
    %718 = vmatprep.subr.mxu0 0.0
    %719 = vmatpush1.msra.mxu0 0.0
    %720 = vmatprep.subr.mxu0 0.0
    %721 = vmatpush1.msra.mxu0 0.0
    %722 = vmatprep.subr.mxu0 0.0
    %723 = vmatpush1.msra.mxu0 0.0
    %724 = vmatprep.subr.mxu0 0.0
    %725 = vmatpush1.msra.mxu0 0.0
    %726 = vmatprep.subr.mxu0 0.0
    %727 = vmatpush1.msra.mxu0 0.0
    %728 = vmatprep.subr.mxu0 0.0
    %729 = vmatpush1.msra.mxu0 0.0
    %730 = vmatprep.subr.mxu0 0.0
    %731 = vmatpush1.msra.mxu0 0.0
    %732 = vmatprep.subr.mxu0 0.0
    %733 = vmatpush1.msra.mxu0 0.0
    %734 = vmatprep.subr.mxu0 0.0
    %735 = vmatpush1.msra.mxu0 0.0
    %736 = vmatprep.subr.mxu0 0.0
    %737 = vmatpush1.msra.mxu0 0.0
    %738 = vmatprep.subr.mxu0 0.0
    %739 = vmatpush1.msra.mxu0 0.0
    %740 = vmatprep.subr.mxu0 0.0
    %741 = vmatpush1.msra.mxu0 0.0
    %742 = vmatprep.subr.mxu0 0.0
    %743 = vmatpush1.msra.mxu0 0.0
    %744 = vmatprep.subr.mxu0 0.0
    %745 = vmatpush1.msra.mxu0 0.0
    %746 = vmatprep.subr.mxu0 0.0
    %747 = vmatpush1.msra.mxu0 0.0
    %748 = vmatprep.subr.mxu0 0.0
    %749 = vmatpush1.msra.mxu0 0.0
    %750 = vmatprep.subr.mxu0 0.0
    %751 = vmatpush1.msra.mxu0 0.0
    %752 = vmatprep.subr.mxu0 0.0
    %753 = vmatpush1.msra.mxu0 0.0
    %754 = vmatprep.mubr.f32.mxu0 0.0
    %755 = vmatmul.mubr.f32.gmra.mrb[0].mxu0 %v367
    %v756 = vpop.f32.mrb[0].mxu0
    %v757 = vadd.f32 0.0, %v756
    %v758 = vpop.f32.mrb[0].mxu0
    %759 = vmatprep.mubr.f32.mxu0 0.0
    %760 = vmatmul.mubr.f32.gmra.mrb[0].mxu0 %v370
    %v761 = vpop.f32.mrb[0].mxu0
    %v762 = vadd.f32 0.0, %v761
    %v763 = vpop.f32.mrb[0].mxu0
    %764 = vdwg.mxu0
    %v766 = vsel %vm234, %v757, 0
    %v769 = vsel %vm234, %v762, 0
    %771 = vmatprep.subr.mxu0 0.0
    %772 = vmatpush1.msra.mxu0 %v137
    %773 = vmatprep.subr.mxu0 0.0
    %774 = vmatpush1.msra.mxu0 %v138
    %775 = vmatprep.subr.mxu0 0.0
    %776 = vmatpush1.msra.mxu0 %v139
    %777 = vmatprep.subr.mxu0 0.0
    %778 = vmatpush1.msra.mxu0 %v140
    %779 = vmatprep.subr.mxu0 0.0
    %780 = vmatpush1.msra.mxu0 0.0
    %781 = vmatprep.subr.mxu0 0.0
    %782 = vmatpush1.msra.mxu0 0.0
    %783 = vmatprep.subr.mxu0 0.0
    %784 = vmatpush1.msra.mxu0 0.0
    %785 = vmatprep.subr.mxu0 0.0
    %786 = vmatpush1.msra.mxu0 0.0
    %787 = vmatprep.subr.mxu0 0.0
    %788 = vmatpush1.msra.mxu0 0.0
    %789 = vmatprep.subr.mxu0 0.0
    %790 = vmatpush1.msra.mxu0 0.0
    %791 = vmatprep.subr.mxu0 0.0
    %792 = vmatpush1.msra.mxu0 0.0
    %793 = vmatprep.subr.mxu0 0.0
    %794 = vmatpush1.msra.mxu0 0.0
    %795 = vmatprep.subr.mxu0 0.0
    %796 = vmatpush1.msra.mxu0 0.0
    %797 = vmatprep.subr.mxu0 0.0
    %798 = vmatpush1.msra.mxu0 0.0
    %799 = vmatprep.subr.mxu0 0.0
    %800 = vmatpush1.msra.mxu0 0.0
    %801 = vmatprep.subr.mxu0 0.0
    %802 = vmatpush1.msra.mxu0 0.0
    %803 = vmatprep.subr.mxu0 0.0
    %804 = vmatpush1.msra.mxu0 0.0
    %805 = vmatprep.subr.mxu0 0.0
    %806 = vmatpush1.msra.mxu0 0.0
    %807 = vmatprep.subr.mxu0 0.0
    %808 = vmatpush1.msra.mxu0 0.0
    %809 = vmatprep.subr.mxu0 0.0
    %810 = vmatpush1.msra.mxu0 0.0
    %811 = vmatprep.subr.mxu0 0.0
    %812 = vmatpush1.msra.mxu0 0.0
    %813 = vmatprep.subr.mxu0 0.0
    %814 = vmatpush1.msra.mxu0 0.0
    %815 = vmatprep.subr.mxu0 0.0
    %816 = vmatpush1.msra.mxu0 0.0
    %817 = vmatprep.subr.mxu0 0.0
    %818 = vmatpush1.msra.mxu0 0.0
    %819 = vmatprep.subr.mxu0 0.0
    %820 = vmatpush1.msra.mxu0 0.0
    %821 = vmatprep.subr.mxu0 0.0
    %822 = vmatpush1.msra.mxu0 0.0
    %823 = vmatprep.subr.mxu0 0.0
    %824 = vmatpush1.msra.mxu0 0.0
    %825 = vmatprep.subr.mxu0 0.0
    %826 = vmatpush1.msra.mxu0 0.0
    %827 = vmatprep.subr.mxu0 0.0
    %828 = vmatpush1.msra.mxu0 0.0
    %829 = vmatprep.subr.mxu0 0.0
    %830 = vmatpush1.msra.mxu0 0.0
    %831 = vmatprep.subr.mxu0 0.0
    %832 = vmatpush1.msra.mxu0 0.0
    %833 = vmatprep.subr.mxu0 0.0
    %834 = vmatpush1.msra.mxu0 0.0
    %835 = vmatprep.mubr.f32.mxu0 0.0
    %836 = vmatmul.mubr.f32.gmra.mrb[0].mxu0 %v766
    %v837 = vpop.f32.mrb[0].mxu0
    %v838 = vadd.f32 0.0, %v837
    %v839 = vpop.f32.mrb[0].mxu0
    %840 = vmatprep.mubr.f32.mxu0 0.0
    %841 = vmatmul.mubr.f32.gmra.mrb[0].mxu0 %v769
    %v842 = vpop.f32.mrb[0].mxu0
    %v843 = vadd.f32 0.0, %v842
    %v844 = vpop.f32.mrb[0].mxu0
    %845 = vdwg.mxu0
    %846 = vmatprep.subr.mxu0 0.0
    %847 = vmatpush1.msra.mxu0 %v133
    %848 = vmatprep.subr.mxu0 0.0
    %849 = vmatpush1.msra.mxu0 %v134
    %850 = vmatprep.subr.mxu0 0.0
    %851 = vmatpush1.msra.mxu0 0.0
    %852 = vmatprep.subr.mxu0 0.0
    %853 = vmatpush1.msra.mxu0 0.0
    %854 = vmatprep.subr.mxu0 0.0
    %855 = vmatpush1.msra.mxu0 0.0
    %856 = vmatprep.subr.mxu0 0.0
    %857 = vmatpush1.msra.mxu0 0.0
    %858 = vmatprep.subr.mxu0 0.0
    %859 = vmatpush1.msra.mxu0 0.0
    %860 = vmatprep.subr.mxu0 0.0
    %861 = vmatpush1.msra.mxu0 0.0
    %862 = vmatprep.subr.mxu0 0.0
    %863 = vmatpush1.msra.mxu0 0.0
    %864 = vmatprep.subr.mxu0 0.0
    %865 = vmatpush1.msra.mxu0 0.0
    %866 = vmatprep.subr.mxu0 0.0
    %867 = vmatpush1.msra.mxu0 0.0
    %868 = vmatprep.subr.mxu0 0.0
    %869 = vmatpush1.msra.mxu0 0.0
    %870 = vmatprep.subr.mxu0 0.0
    %871 = vmatpush1.msra.mxu0 0.0
    %872 = vmatprep.subr.mxu0 0.0
    %873 = vmatpush1.msra.mxu0 0.0
    %874 = vmatprep.subr.mxu0 0.0
    %875 = vmatpush1.msra.mxu0 0.0
    %876 = vmatprep.subr.mxu0 0.0
    %877 = vmatpush1.msra.mxu0 0.0
    %878 = vmatprep.subr.mxu0 0.0
    %879 = vmatpush1.msra.mxu0 0.0
    %880 = vmatprep.subr.mxu0 0.0
    %881 = vmatpush1.msra.mxu0 0.0
    %882 = vmatprep.subr.mxu0 0.0
    %883 = vmatpush1.msra.mxu0 0.0
    %884 = vmatprep.subr.mxu0 0.0
    %885 = vmatpush1.msra.mxu0 0.0
    %886 = vmatprep.subr.mxu0 0.0
    %887 = vmatpush1.msra.mxu0 0.0
    %888 = vmatprep.subr.mxu0 0.0
    %889 = vmatpush1.msra.mxu0 0.0
    %890 = vmatprep.subr.mxu0 0.0
    %891 = vmatpush1.msra.mxu0 0.0
    %892 = vmatprep.subr.mxu0 0.0
    %893 = vmatpush1.msra.mxu0 0.0
    %894 = vmatprep.subr.mxu0 0.0
    %895 = vmatpush1.msra.mxu0 0.0
    %896 = vmatprep.subr.mxu0 0.0
    %897 = vmatpush1.msra.mxu0 0.0
    %898 = vmatprep.subr.mxu0 0.0
    %899 = vmatpush1.msra.mxu0 0.0
    %900 = vmatprep.subr.mxu0 0.0
    %901 = vmatpush1.msra.mxu0 0.0
    %902 = vmatprep.subr.mxu0 0.0
    %903 = vmatpush1.msra.mxu0 0.0
    %904 = vmatprep.subr.mxu0 0.0
    %905 = vmatpush1.msra.mxu0 0.0
    %906 = vmatprep.subr.mxu0 0.0
    %907 = vmatpush1.msra.mxu0 0.0
    %908 = vmatprep.subr.mxu0 0.0
    %909 = vmatpush1.msra.mxu0 0.0
    %910 = vmatprep.mubr.f32.mxu0 0.0
    %911 = vmatmul.mubr.f32.gmra.mrb[0].mxu0 %v154
    %v912 = vpop.f32.mrb[0].mxu0
    %v913 = vadd.f32 0.0, %v912
    %v914 = vpop.f32.mrb[0].mxu0
    %915 = vmatprep.mubr.f32.mxu0 0.0
    %916 = vmatmul.mubr.f32.gmra.mrb[0].mxu0 %v157
    %v917 = vpop.f32.mrb[0].mxu0
    %v918 = vadd.f32 0.0, %v917
    %v919 = vpop.f32.mrb[0].mxu0
    %920 = vdwg.mxu0
    %v922 = vsel %vm234, %v913, 0
    %v925 = vsel %vm234, %v918, 0
    %927 = vmatprep.subr.mxu0 0.0
    %928 = vmatpush1.xpose.msra.mxu0 %v242
    %929 = vmatprep.subr.mxu0 0.0
    %930 = vmatpush1.xpose.msra.mxu0 %v245
    %931 = vmatprep.subr.mxu0 0.0
    %932 = vmatpush1.xpose.msra.mxu0 %v248
    %933 = vmatprep.subr.mxu0 0.0
    %934 = vmatpush1.xpose.msra.mxu0 %v251
    %935 = vmatprep.subr.mxu0 0.0
    %936 = vmatpush1.xpose.msra.mxu0 0.0
    %937 = vmatprep.subr.mxu0 0.0
    %938 = vmatpush1.xpose.msra.mxu0 0.0
    %939 = vmatprep.subr.mxu0 0.0
    %940 = vmatpush1.xpose.msra.mxu0 0.0
    %941 = vmatprep.subr.mxu0 0.0
    %942 = vmatpush1.xpose.msra.mxu0 0.0
    %943 = vmatprep.subr.mxu0 0.0
    %944 = vmatpush1.xpose.msra.mxu0 0.0
    %945 = vmatprep.subr.mxu0 0.0
    %946 = vmatpush1.xpose.msra.mxu0 0.0
    %947 = vmatprep.subr.mxu0 0.0
    %948 = vmatpush1.xpose.msra.mxu0 0.0
    %949 = vmatprep.subr.mxu0 0.0
    %950 = vmatpush1.xpose.msra.mxu0 0.0
    %951 = vmatprep.subr.mxu0 0.0
    %952 = vmatpush1.xpose.msra.mxu0 0.0
    %953 = vmatprep.subr.mxu0 0.0
    %954 = vmatpush1.xpose.msra.mxu0 0.0
    %955 = vmatprep.subr.mxu0 0.0
    %956 = vmatpush1.xpose.msra.mxu0 0.0
    %957 = vmatprep.subr.mxu0 0.0
    %958 = vmatpush1.xpose.msra.mxu0 0.0
    %959 = vmatprep.subr.mxu0 0.0
    %960 = vmatpush1.xpose.msra.mxu0 0.0
    %961 = vmatprep.subr.mxu0 0.0
    %962 = vmatpush1.xpose.msra.mxu0 0.0
    %963 = vmatprep.subr.mxu0 0.0
    %964 = vmatpush1.xpose.msra.mxu0 0.0
    %965 = vmatprep.subr.mxu0 0.0
    %966 = vmatpush1.xpose.msra.mxu0 0.0
    %967 = vmatprep.subr.mxu0 0.0
    %968 = vmatpush1.xpose.msra.mxu0 0.0
    %969 = vmatprep.subr.mxu0 0.0
    %970 = vmatpush1.xpose.msra.mxu0 0.0
    %971 = vmatprep.subr.mxu0 0.0
    %972 = vmatpush1.xpose.msra.mxu0 0.0
    %973 = vmatprep.subr.mxu0 0.0
    %974 = vmatpush1.xpose.msra.mxu0 0.0
    %975 = vmatprep.subr.mxu0 0.0
    %976 = vmatpush1.xpose.msra.mxu0 0.0
    %977 = vmatprep.subr.mxu0 0.0
    %978 = vmatpush1.xpose.msra.mxu0 0.0
    %979 = vmatprep.subr.mxu0 0.0
    %980 = vmatpush1.xpose.msra.mxu0 0.0
    %981 = vmatprep.subr.mxu0 0.0
    %982 = vmatpush1.xpose.msra.mxu0 0.0
    %983 = vmatprep.subr.mxu0 0.0
    %984 = vmatpush1.xpose.msra.mxu0 0.0
    %985 = vmatprep.subr.mxu0 0.0
    %986 = vmatpush1.xpose.msra.mxu0 0.0
    %987 = vmatprep.subr.mxu0 0.0
    %988 = vmatpush1.xpose.msra.mxu0 0.0
    %989 = vmatprep.subr.mxu0 0.0
    %990 = vmatpush1.xpose.msra.mxu0 0.0
    %991 = vmatprep.mubr.f32.mxu0 0.0
    %992 = vmatmul.mubr.f32.gmra.mrb[0].mxu0 %v922
    %v993 = vpop.f32.mrb[0].mxu0
    %v994 = vadd.f32 0.0, %v993
    %v995 = vpop.f32.mrb[0].mxu0
    %996 = vmatprep.mubr.f32.mxu0 0.0
    %997 = vmatmul.mubr.f32.gmra.mrb[0].mxu0 %v925
    %v998 = vpop.f32.mrb[0].mxu0
    %v999 = vadd.f32 0.0, %v998
    %v1000 = vpop.f32.mrb[0].mxu0
    %1001 = vdwg.mxu0
    %v1002 = vmul.f32 %v994, %v150
    %v1003 = vmul.f32 %v999, %v151
    %v1004 = vround.ne.pseudo %v1002
    %v1005 = vround.ne.pseudo %v1003
    %v1006 = vmul.f32 %v1004, %v147
    %v1007 = vmul.f32 %v1005, %v148
    %1008 = vmatprep.subr.mxu0 0.0
    %1009 = vmatpush1.msra.mxu0 %v1006
    %1010 = vmatprep.subr.mxu0 0.0
    %1011 = vmatpush1.msra.mxu0 %v1007
    %1012 = vmatprep.subr.mxu0 0.0
    %1013 = vmatpush1.msra.mxu0 0.0
    %1014 = vmatprep.subr.mxu0 0.0
    %1015 = vmatpush1.msra.mxu0 0.0
    %1016 = vmatprep.subr.mxu0 0.0
    %1017 = vmatpush1.msra.mxu0 0.0
    %1018 = vmatprep.subr.mxu0 0.0
    %1019 = vmatpush1.msra.mxu0 0.0
    %1020 = vmatprep.subr.mxu0 0.0
    %1021 = vmatpush1.msra.mxu0 0.0
    %1022 = vmatprep.subr.mxu0 0.0
    %1023 = vmatpush1.msra.mxu0 0.0
    %1024 = vmatprep.subr.mxu0 0.0
    %1025 = vmatpush1.msra.mxu0 0.0
    %1026 = vmatprep.subr.mxu0 0.0
    %1027 = vmatpush1.msra.mxu0 0.0
    %1028 = vmatprep.subr.mxu0 0.0
    %1029 = vmatpush1.msra.mxu0 0.0
    %1030 = vmatprep.subr.mxu0 0.0
    %1031 = vmatpush1.msra.mxu0 0.0
    %1032 = vmatprep.subr.mxu0 0.0
    %1033 = vmatpush1.msra.mxu0 0.0
    %1034 = vmatprep.subr.mxu0 0.0
    %1035 = vmatpush1.msra.mxu0 0.0
    %1036 = vmatprep.subr.mxu0 0.0
    %1037 = vmatpush1.msra.mxu0 0.0
    %1038 = vmatprep.subr.mxu0 0.0
    %1039 = vmatpush1.msra.mxu0 0.0
    %1040 = vmatprep.subr.mxu0 0.0
    %1041 = vmatpush1.msra.mxu0 0.0
    %1042 = vmatprep.subr.mxu0 0.0
    %1043 = vmatpush1.msra.mxu0 0.0
    %1044 = vmatprep.subr.mxu0 0.0
    %1045 = vmatpush1.msra.mxu0 0.0
    %1046 = vmatprep.subr.mxu0 0.0
    %1047 = vmatpush1.msra.mxu0 0.0
    %1048 = vmatprep.subr.mxu0 0.0
    %1049 = vmatpush1.msra.mxu0 0.0
    %1050 = vmatprep.subr.mxu0 0.0
    %1051 = vmatpush1.msra.mxu0 0.0
    %1052 = vmatprep.subr.mxu0 0.0
    %1053 = vmatpush1.msra.mxu0 0.0
    %1054 = vmatprep.subr.mxu0 0.0
    %1055 = vmatpush1.msra.mxu0 0.0
    %1056 = vmatprep.subr.mxu0 0.0
    %1057 = vmatpush1.msra.mxu0 0.0
    %1058 = vmatprep.subr.mxu0 0.0
    %1059 = vmatpush1.msra.mxu0 0.0
    %1060 = vmatprep.subr.mxu0 0.0
    %1061 = vmatpush1.msra.mxu0 0.0
    %1062 = vmatprep.subr.mxu0 0.0
    %1063 = vmatpush1.msra.mxu0 0.0
    %1064 = vmatprep.subr.mxu0 0.0
    %1065 = vmatpush1.msra.mxu0 0.0
    %1066 = vmatprep.subr.mxu0 0.0
    %1067 = vmatpush1.msra.mxu0 0.0
    %1068 = vmatprep.subr.mxu0 0.0
    %1069 = vmatpush1.msra.mxu0 0.0
    %1070 = vmatprep.subr.mxu0 0.0
    %1071 = vmatpush1.msra.mxu0 0.0
    %1072 = vmatprep.mubr.f32.mxu0 0.0
    %1073 = vmatmul.mubr.f32.gmra.mrb[0].mxu0 %v367
    %v1074 = vpop.f32.mrb[0].mxu0
    %v1075 = vadd.f32 0.0, %v1074
    %v1076 = vpop.f32.mrb[0].mxu0
    %1077 = vmatprep.mubr.f32.mxu0 0.0
    %1078 = vmatmul.mubr.f32.gmra.mrb[0].mxu0 %v370
    %v1079 = vpop.f32.mrb[0].mxu0
    %v1080 = vadd.f32 0.0, %v1079
    %v1081 = vpop.f32.mrb[0].mxu0
    %1082 = vdwg.mxu0
    %v1084 = vsel %vm234, %v1075, 0
    %v1087 = vsel %vm234, %v1080, 0
    %1089 = vmatprep.subr.mxu0 0.0
    %1090 = vmatpush1.msra.mxu0 %v137
    %1091 = vmatprep.subr.mxu0 0.0
    %1092 = vmatpush1.msra.mxu0 %v138
    %1093 = vmatprep.subr.mxu0 0.0
    %1094 = vmatpush1.msra.mxu0 %v139
    %1095 = vmatprep.subr.mxu0 0.0
    %1096 = vmatpush1.msra.mxu0 %v140
    %1097 = vmatprep.subr.mxu0 0.0
    %1098 = vmatpush1.msra.mxu0 0.0
    %1099 = vmatprep.subr.mxu0 0.0
    %1100 = vmatpush1.msra.mxu0 0.0
    %1101 = vmatprep.subr.mxu0 0.0
    %1102 = vmatpush1.msra.mxu0 0.0
    %1103 = vmatprep.subr.mxu0 0.0
    %1104 = vmatpush1.msra.mxu0 0.0
    %1105 = vmatprep.subr.mxu0 0.0
    %1106 = vmatpush1.msra.mxu0 0.0
    %1107 = vmatprep.subr.mxu0 0.0
    %1108 = vmatpush1.msra.mxu0 0.0
    %1109 = vmatprep.subr.mxu0 0.0
    %1110 = vmatpush1.msra.mxu0 0.0
    %1111 = vmatprep.subr.mxu0 0.0
    %1112 = vmatpush1.msra.mxu0 0.0
    %1113 = vmatprep.subr.mxu0 0.0
    %1114 = vmatpush1.msra.mxu0 0.0
    %1115 = vmatprep.subr.mxu0 0.0
    %1116 = vmatpush1.msra.mxu0 0.0
    %1117 = vmatprep.subr.mxu0 0.0
    %1118 = vmatpush1.msra.mxu0 0.0
    %1119 = vmatprep.subr.mxu0 0.0
    %1120 = vmatpush1.msra.mxu0 0.0
    %1121 = vmatprep.subr.mxu0 0.0
    %1122 = vmatpush1.msra.mxu0 0.0
    %1123 = vmatprep.subr.mxu0 0.0
    %1124 = vmatpush1.msra.mxu0 0.0
    %1125 = vmatprep.subr.mxu0 0.0
    %1126 = vmatpush1.msra.mxu0 0.0
    %1127 = vmatprep.subr.mxu0 0.0
    %1128 = vmatpush1.msra.mxu0 0.0
    %1129 = vmatprep.subr.mxu0 0.0
    %1130 = vmatpush1.msra.mxu0 0.0
    %1131 = vmatprep.subr.mxu0 0.0
    %1132 = vmatpush1.msra.mxu0 0.0
    %1133 = vmatprep.subr.mxu0 0.0
    %1134 = vmatpush1.msra.mxu0 0.0
    %1135 = vmatprep.subr.mxu0 0.0
    %1136 = vmatpush1.msra.mxu0 0.0
    %1137 = vmatprep.subr.mxu0 0.0
    %1138 = vmatpush1.msra.mxu0 0.0
    %1139 = vmatprep.subr.mxu0 0.0
    %1140 = vmatpush1.msra.mxu0 0.0
    %1141 = vmatprep.subr.mxu0 0.0
    %1142 = vmatpush1.msra.mxu0 0.0
    %1143 = vmatprep.subr.mxu0 0.0
    %1144 = vmatpush1.msra.mxu0 0.0
    %1145 = vmatprep.subr.mxu0 0.0
    %1146 = vmatpush1.msra.mxu0 0.0
    %1147 = vmatprep.subr.mxu0 0.0
    %1148 = vmatpush1.msra.mxu0 0.0
    %1149 = vmatprep.subr.mxu0 0.0
    %1150 = vmatpush1.msra.mxu0 0.0
    %1151 = vmatprep.subr.mxu0 0.0
    %1152 = vmatpush1.msra.mxu0 0.0
    %1153 = vmatprep.mubr.f32.mxu0 0.0
    %1154 = vmatmul.mubr.f32.gmra.mrb[0].mxu0 %v1084
    %v1155 = vpop.f32.mrb[0].mxu0
    %v1156 = vadd.f32 0.0, %v1155
    %v1157 = vpop.f32.mrb[0].mxu0
    %1158 = vmatprep.mubr.f32.mxu0 0.0
    %1159 = vmatmul.mubr.f32.gmra.mrb[0].mxu0 %v1087
    %v1160 = vpop.f32.mrb[0].mxu0
    %v1161 = vadd.f32 0.0, %v1160
    %v1162 = vpop.f32.mrb[0].mxu0
    %1163 = vdwg.mxu0
    %v1164 = vmul.f32 %v1156, 1.402
    %v1165 = vmul.f32 %v1161, 1.402
    %v1166 = vadd.f32 %v520, %v1164
    %v1167 = vadd.f32 %v525, %v1165
    %v1168 = vmul.f32 %v838, 0.344136
    %v1169 = vmul.f32 %v843, 0.344136
    %v1170 = vsub.f32 %v520, %v1168
    %v1171 = vsub.f32 %v525, %v1169
    %v1172 = vmul.f32 %v1156, 0.714136
    %v1173 = vmul.f32 %v1161, 0.714136
    %v1174 = vsub.f32 %v1170, %v1172
    %v1175 = vsub.f32 %v1171, %v1173
    %v1176 = vmul.f32 %v838, 1.772
    %v1177 = vmul.f32 %v843, 1.772
    %v1178 = vadd.f32 %v520, %v1176
    %v1179 = vadd.f32 %v525, %v1177
    %v1180 = vmax.f32 %v1166, 0.0
    %v1181 = vmax.f32 %v1167, 0.0
    %v1182 = vmin.f32 %v1180, 255.0
    %v1183 = vmin.f32 %v1181, 255.0
    %v1184 = vround.ne.pseudo %v1182
    %v1185 = vround.ne.pseudo %v1183
    %v1186 = vmul.f32 %v1184, 0.003921569
    %v1187 = vmul.f32 %v1185, 0.003921569
    %1188 = vst.msk [vmem:[#allocation10] sm:$0xff] %vm234, %v1186
    %1189 = vst.msk [vmem:[#allocation10 + $0x8] sm:$0xff] %vm234, %v1187
    %v1190 = vmax.f32 %v1174, 0.0
    %v1191 = vmax.f32 %v1175, 0.0
    %v1192 = vmin.f32 %v1190, 255.0
    %v1193 = vmin.f32 %v1191, 255.0
    %v1194 = vround.ne.pseudo %v1192
    %v1195 = vround.ne.pseudo %v1193
    %v1196 = vmul.f32 %v1194, 0.003921569
    %v1197 = vmul.f32 %v1195, 0.003921569
    %s1198 = scalar_lea.vmem [#allocation10], 16
    %1199 = vst.msk [vmem:[%s1198] sm:$0xff] %vm234, %v1196
    %1200 = vst.msk [vmem:[%s1198 + $0x8] sm:$0xff] %vm234, %v1197
    %v1201 = vmax.f32 %v1178, 0.0
    %v1202 = vmax.f32 %v1179, 0.0
    %v1203 = vmin.f32 %v1201, 255.0
    %v1204 = vmin.f32 %v1202, 255.0
    %v1205 = vround.ne.pseudo %v1203
    %v1206 = vround.ne.pseudo %v1204
    %v1207 = vmul.f32 %v1205, 0.003921569
    %v1208 = vmul.f32 %v1206, 0.003921569
    %s1209 = scalar_lea.vmem [#allocation10], 32
    %1210 = vst.msk [vmem:[%s1209] sm:$0xff] %vm234, %v1207
    %1211 = vst.msk [vmem:[%s1209 + $0x8] sm:$0xff] %vm234, %v1208
    // Predicated region
    $region34: #{tpu_custom_call.1} parent=1 // pred_check
      _
    $region35: #{tpu_custom_call.1} parent=1 // pred_check_branch
      %1213 = sbr.rel (0) target = $region37
    $region36: #{tpu_custom_call.1} parent=1 // pred_region
      %s1215 = ssub.s32 768, 768
      %1216 = vsyncadd [#allocation4], %s1215
      %s1217 = sshll.u32 [#allocation10], 4
      %s1218 = int_to_ptr.vmem [resolvable:$true] %s1217
      %1223 = dma.vmem_to_hbm [thread:$0]  %s1218, 768, %s4, [#allocation4], 128, 128, 8
    $region37: #{tpu_custom_call.1} parent=1 // pred_fallthru
      _
    // Predicated region
    $region38: #{tpu_custom_call.1} parent=1 // pred_check
      _
    $region39: #{tpu_custom_call.1} parent=1 // pred_check_branch
      %1225 = sbr.rel (0) target = $region41
    $region40: #{tpu_custom_call.1} parent=1 // pred_region
      %1226 = dma.done [#allocation4], 768
    $region41: #{tpu_custom_call.1} parent=1 // pred_fallthru
      _
    %1227 = vsyncpa [#allocation3], 1
    %1228 = vsyncpa [#allocation6], 1
    %1229 = vsyncpa [#allocation9], 1
    %1230 = vsyncpa [#allocation4], 1

</llo_original>
